<compile_context>
chip_gen: v7x
topology: tpu7x:2x2x1
jax: 0.10.0
libtpu: 0.0.40
codegen_flags: <defaults>
</compile_context>

<pallas_src>
import functools

import numpy as np
import jax
import jax.numpy as jnp
from jax.experimental import pallas as pl
from jax.experimental.pallas import tpu as pltpu

# ------------------ sarModule configuration (small test sizes) ------------------
IN_CH = 16
OUT_CH = 16
BLOCKS = 2          # base/refine modules each have BLOCKS-1 = 1 block
STRIDE = 1          # fusion stride (1 -> fusion block has identity residual)
GROUPS = 2          # patch_groups (both groups get the same checkerboard mask)
MASK_SIZE = 4
ALPHA = 1
BETA = 1
BASE_SCALE = 2      # base path is computed at half resolution
BN_EPS = 1e-5

# (dh, dw) offsets in k = kh*3 + kw order so tap k matches the packed weights.
_OFFS = tuple((dh, dw) for dh in (-1, 0, 1) for dw in (-1, 0, 1))


# ------------------------------- fused Pallas kernel -----------------------------
def _stack9_taps(x2d, gates, Wc, use_roll):
    """Stack the 9 shifted+gated taps of x2d along sublanes -> (9*C, L) bf16.

    Row k*C + c holds pixel (h+dh, w+dw) of channel c (zero when the tap falls
    outside the image), matching column k*Cin + c of the packed conv weights.
    """
    L = x2d.shape[1]
    parts = []
    for k, (dh, dw) in enumerate(_OFFS):
        d = dh * Wc + dw
        if d == 0:
            xs = x2d                                     # centre tap, gate == 1
        elif use_roll:
            # out[:, i] = x2d[:, (i + d) mod L]; wrapped lanes zeroed by the gate.
            xs = pltpu.roll(x2d, (-d) % L, axis=1)
        else:
            xs = jnp.concatenate([x2d[:, d:], x2d[:, :d]], axis=1)
        if (dh, dw) != (0, 0):
            xs = xs * gates[k:k + 1, :]
        parts.append(xs.astype(jnp.bfloat16))
    return jnp.concatenate(parts, axis=0)


def _sar_kernel(x_ref, ghi_ref, glo_ref, s_ref, u_ref, mg_ref,
                wbig_ref, shbig_ref,
                wb2_ref, shb2_ref, wr2_ref, shr2_ref,
                wf1_ref, shf1_ref, wf2_ref, shf2_ref,
                o_ref, *, H, W):
    C = OUT_CH
    L = H * W
    Wb = W // BASE_SCALE

    x = x_ref[...]                                   # (Cin, L) f32
    g_hi = ghi_ref[...]                              # (9, L)   f32 boundary gates
    g_lo = glo_ref[...]                              # (9, Lb)  f32 boundary gates
    mgate = mg_ref[...]                              # (1, L)   f32 checkerboard

    # ---- one stacked operand of x feeds base-conv1, the AvgPool sum AND refine-conv1
    xs = _stack9_taps(x, g_hi, W, use_roll=True)                       # (9*Cin, L) bf16
    pre = jnp.dot(wbig_ref[...], xs,
                  preferred_element_type=jnp.float32) + shbig_ref[...]  # (3C, L)
    # rows [0:C)  = base conv1 pre-act (stride-2 conv evaluated at full res)
    # rows [C:2C) = AvgPool2d(3,1,1)(x)   (full res, /9 folded into the weights)
    # rows [2C:3C)= refine conv1 pre-act
    r1 = jnp.maximum(pre[2 * C:3 * C], 0.0)

    # ---- stride-2 subsample of [conv1 ; pool] with a single bf16 selector matmul.
    # (ReLU commutes with the 0/1 selector, so it is applied after subsampling.)
    lo = jnp.dot(pre[0:2 * C].astype(jnp.bfloat16), s_ref[...],
                 preferred_element_type=jnp.float32)                    # (2C, Lb)
    b1_lo = jnp.maximum(lo[0:C], 0.0)                 # base conv1-BN-ReLU, low res
    idn = lo[C:2 * C]                                 # AvgPool2d(3, stride=2, pad=1)

    # ---- base conv2-BN (low res) + avg-pool residual, ReLU ------------------------
    bs = _stack9_taps(b1_lo, g_lo, Wb, use_roll=False)                  # (9C, Lb) bf16
    b2 = jnp.dot(wb2_ref[...], bs,
                 preferred_element_type=jnp.float32) + shb2_ref[...]
    x_base = jnp.maximum(b2 + idn, 0.0)                                 # (C, Lb)

    # ---- refine conv2-BN, checkerboard-gated residual, ReLU -----------------------
    rs = _stack9_taps(r1, g_hi, W, use_roll=True)
    r2 = jnp.dot(wr2_ref[...], rs,
                 preferred_element_type=jnp.float32) + shr2_ref[...]
    x_refine = jnp.maximum(r2 * mgate + x, 0.0)                         # (C, L)

    # ---- nearest 2x upsample of the base path (bf16 selector matmul) + add + ReLU --
    up = jnp.dot(x_base.astype(jnp.bfloat16), u_ref[...],
                 preferred_element_type=jnp.float32)                    # (C, L)
    fused = jnp.maximum(up + x_refine, 0.0)

    # ---- fusion block (stride 1): conv-BN-ReLU -> conv-BN, identity residual, ReLU --
    fs = _stack9_taps(fused, g_hi, W, use_roll=True)
    f1 = jnp.maximum(jnp.dot(wf1_ref[...], fs,
                             preferred_element_type=jnp.float32) + shf1_ref[...], 0.0)
    f1s = _stack9_taps(f1, g_hi, W, use_roll=True)
    f2 = jnp.dot(wf2_ref[...], f1s,
                 preferred_element_type=jnp.float32) + shf2_ref[...]
    o_ref[...] = jnp.maximum(f2 + fused, 0.0)                           # (C, L)


# ------------------------------ host-side constants --------------------------------
def _build_constants(H, W):
    """Boundary gates, stride-2/upsample selectors and the checkerboard gate."""
    L = H * W
    Hb, Wb = H // BASE_SCALE, W // BASE_SCALE
    Lb = Hb * Wb
    p = np.arange(L)
    h, w = p // W, p % W
    pb = np.arange(Lb)
    hb, wb = pb // Wb, pb % Wb

    g_hi = np.stack([((h + dh >= 0) & (h + dh < H) & (w + dw >= 0) & (w + dw < W))
                     for dh, dw in _OFFS]).astype(np.float32)            # (9, L)
    g_lo = np.stack([((hb + dh >= 0) & (hb + dh < Hb) & (wb + dw >= 0) & (wb + dw < Wb))
                     for dh, dw in _OFFS]).astype(np.float32)            # (9, Lb)

    # S: (L, Lb) stride-2 subsample selector.  U: (Lb, L) nearest-2x upsample selector.
    S = (p[:, None] == (hb * BASE_SCALE * W + wb * BASE_SCALE)[None, :]).astype(np.float32)
    U = (pb[:, None] == ((h // BASE_SCALE) * Wb + (w // BASE_SCALE))[None, :]).astype(np.float32)

    # Fixed checkerboard patch mask, nearest-upsampled from (MASK_SIZE, MASK_SIZE).
    # Both patch groups share the same pattern -> the gate is channel independent.
    bh, bw = H // MASK_SIZE, W // MASK_SIZE
    mgate = (((h // bh + w // bw) % 2) == 0).astype(np.float32).reshape(1, L)

    return (jnp.asarray(g_hi), jnp.asarray(g_lo),
            jnp.asarray(S, dtype=jnp.bfloat16), jnp.asarray(U, dtype=jnp.bfloat16),
            jnp.asarray(mgate))


# ---------------------------------- wrapper ---------------------------------------
def _full_spec(a):
    nd = a.ndim
    return pl.BlockSpec(a.shape, lambda n, _nd=nd: (0,) * _nd)


def sar_module_forward(x_nchw, P):
    """sarModule.forward for the BLOCKS=2, alpha=beta=1, stride=1 configuration."""
    N, C, H, W = x_nchw.shape
    assert C == IN_CH and IN_CH == OUT_CH and ALPHA == 1 and BETA == 1 and STRIDE == 1
    assert H % BASE_SCALE == 0 and W % BASE_SCALE == 0
    assert H % MASK_SIZE == 0 and W % MASK_SIZE == 0
    L = H * W
    Lb = (H // BASE_SCALE) * (W // BASE_SCALE)
    K9 = 9 * IN_CH

    g_hi, g_lo, S, U, mgate = _build_constants(H, W)
    const_args = [g_hi, g_lo, S, U, mgate]
    weight_args = [P["w_big1"], P["sh_big1"], P["wb2"], P["shb2"],
                   P["wr2"], P["shr2"], P["wf1"], P["shf1"], P["wf2"], P["shf2"]]

    x2d = x_nchw.astype(jnp.float32).reshape(N * C, L)     # rows = (n, c), free reshape

    flops_per_img = (2 * (3 * OUT_CH) * K9 * L     # fused base1 / pool / refine1 matmul
                     + 2 * (2 * OUT_CH) * L * Lb   # stride-2 subsample selector dot
                     + 2 * OUT_CH * K9 * Lb        # base conv2 (low res)
                     + 3 * 2 * OUT_CH * K9 * L     # refine conv2, fusion conv1/conv2
                     + 2 * OUT_CH * Lb * L)        # nearest-2x upsample selector dot
    bytes_accessed = int(N * IN_CH * L * 4 + N * OUT_CH * L * 4
                         + sum(int(np.prod(a.shape)) * a.dtype.itemsize
                               for a in const_args + weight_args))

    kernel = functools.partial(_sar_kernel, H=H, W=W)
    out2d = pl.pallas_call(
        kernel,
        grid=(N,),
        in_specs=[pl.BlockSpec((IN_CH, L), lambda n: (n, 0))]
                 + [_full_spec(a) for a in const_args + weight_args],
        out_specs=pl.BlockSpec((OUT_CH, L), lambda n: (n, 0)),
        out_shape=jax.ShapeDtypeStruct((N * OUT_CH, L), jnp.float32),
        compiler_params=pltpu.CompilerParams(
            dimension_semantics=("parallel",)),     # v7x: batch split over the 2 TCs
        cost_estimate=pl.CostEstimate(flops=N * flops_per_img, transcendentals=0,
                                      bytes_accessed=bytes_accessed),
    )(x2d, *const_args, *weight_args)

    out = out2d.reshape(N, OUT_CH, H, W)                   # already NCHW order

    # Reference forward overwrites the generated mask with this fixed checkerboard.
    # TODO(synk): maskGen (grouped conv3x3+BN+ReLU, adaptive pool, grouped 1x1,
    # GumbleSoftmax) is dead code at runtime (its output is discarded), so it is
    # not executed; the returned masks match the reference exactly.
    mask = jnp.zeros((1, GROUPS, MASK_SIZE, MASK_SIZE), jnp.float32)
    mask = mask.at[:, :, ::2, ::2].set(1.0)
    mask = mask.at[:, :, 1::2, 1::2].set(1.0)
    return out, [mask]


# ------------------------------ parameter init ------------------------------------
def _rand_bn(key, c):
    k1, k2, k3, k4 = jax.random.split(key, 4)
    gamma = 1.0 + 0.1 * jax.random.normal(k1, (c,), jnp.float32)
    beta = 0.1 * jax.random.normal(k2, (c,), jnp.float32)
    mean = 0.1 * jax.random.normal(k3, (c,), jnp.float32)
    var = jnp.abs(jax.random.normal(k4, (c,), jnp.float32)) + 0.5
    scale = gamma / jnp.sqrt(var + BN_EPS)
    shift = beta - mean * scale
    return scale, shift


def _packed_conv_bn(key, cin, cout):
    """Random 3x3 conv + BN, folded: (cout, 9*cin) bf16 weight and (cout,1) f32 shift."""
    kw, kb = jax.random.split(key)
    w = jax.random.normal(kw, (3, 3, cout, cin), jnp.float32) / jnp.sqrt(9.0 * cin)
    scale, shift = _rand_bn(kb, cout)
    wp = (w * scale[None, None, :, None]).reshape(9, cout, cin)   # k = kh*3 + kw
    wp = jnp.transpose(wp, (1, 0, 2)).reshape(cout, 9 * cin)      # col = k*cin + ci
    return wp.astype(jnp.bfloat16), shift.reshape(cout, 1)


def init_params(key):
    ks = jax.random.split(key, 6)
    wb1, sb1 = _packed_conv_bn(ks[0], IN_CH, OUT_CH)      # base conv1 (stride 2)
    wb2, sb2 = _packed_conv_bn(ks[1], OUT_CH, OUT_CH)     # base conv2
    wr1, sr1 = _packed_conv_bn(ks[2], IN_CH, OUT_CH)      # refine conv1
    wr2, sr2 = _packed_conv_bn(ks[3], OUT_CH, OUT_CH)     # refine conv2
    wf1, sf1 = _packed_conv_bn(ks[4], OUT_CH, OUT_CH)     # fusion conv1
    wf2, sf2 = _packed_conv_bn(ks[5], OUT_CH, OUT_CH)     # fusion conv2

    # AvgPool(3,1,1) as a packed "identity" conv: I_pool[c, k*Cin + c] = 1/9 for all k.
    ipool = jnp.tile(jnp.eye(IN_CH, dtype=jnp.float32) / 9.0, (1, 9)).astype(jnp.bfloat16)

    # Fused LHS for base-conv1 / avgpool / refine-conv1 (row order matters in kernel).
    w_big1 = jnp.concatenate([wb1, ipool, wr1], axis=0)                 # (3C, 9*Cin)
    sh_big1 = jnp.concatenate([sb1, jnp.zeros((IN_CH, 1), jnp.float32), sr1], axis=0)

    return {"w_big1": w_big1, "sh_big1": sh_big1,
            "wb2": wb2, "shb2": sb2,
            "wr2": wr2, "shr2": sr2,
            "wf1": wf1, "shf1": sf1,
            "wf2": wf2, "shf2": sf2}


if __name__ == "__main__":
    key = jax.random.PRNGKey(0)
    kx, kp = jax.random.split(key)
    x = jax.random.normal(kx, (2, IN_CH, 16, 16), jnp.float32)   # NCHW, like PyTorch
    params = init_params(kp)
    fwd = jax.jit(sar_module_forward)
    out, masks = fwd(x, params)
    jax.block_until_ready(out)
    assert out.shape == (2, OUT_CH, 16, 16)
    assert masks[0].shape == (1, GROUPS, MASK_SIZE, MASK_SIZE)
    print("KERNEL_OK")
</pallas_src>

<mosaic_0001>
module attributes {stable_mosaic.version = 11 : i64} {
  func.func @_sar_kernel(%arg0: i32, %arg1: memref<16x256xf32, #tpu.memory_space<vmem>>, %arg2: memref<9x256xf32, #tpu.memory_space<vmem>>, %arg3: memref<9x64xf32, #tpu.memory_space<vmem>>, %arg4: memref<256x64xbf16, #tpu.memory_space<vmem>>, %arg5: memref<64x256xbf16, #tpu.memory_space<vmem>>, %arg6: memref<1x256xf32, #tpu.memory_space<vmem>>, %arg7: memref<48x144xbf16, #tpu.memory_space<vmem>>, %arg8: memref<48x1xf32, #tpu.memory_space<vmem>>, %arg9: memref<16x144xbf16, #tpu.memory_space<vmem>>, %arg10: memref<16x1xf32, #tpu.memory_space<vmem>>, %arg11: memref<16x144xbf16, #tpu.memory_space<vmem>>, %arg12: memref<16x1xf32, #tpu.memory_space<vmem>>, %arg13: memref<16x144xbf16, #tpu.memory_space<vmem>>, %arg14: memref<16x1xf32, #tpu.memory_space<vmem>>, %arg15: memref<16x144xbf16, #tpu.memory_space<vmem>>, %arg16: memref<16x1xf32, #tpu.memory_space<vmem>>, %arg17: memref<16x256xf32, #tpu.memory_space<vmem>>) attributes {dimension_semantics = [#tpu.dimension_semantics<parallel>], iteration_bounds = array<i64: 2>, scalar_prefetch = 0 : i64, scratch_operands = 0 : i64, tpu.core_type = #tpu.core_type<tc>, window_params = [{transform_indices = @transform_0, window_bounds = array<i64: 16, 256>}, {pipeline_mode = #tpu.pipeline_mode<synchronous>, transform_indices = @transform_1, window_bounds = array<i64: 9, 256>}, {pipeline_mode = #tpu.pipeline_mode<synchronous>, transform_indices = @transform_2, window_bounds = array<i64: 9, 64>}, {pipeline_mode = #tpu.pipeline_mode<synchronous>, transform_indices = @transform_3, window_bounds = array<i64: 256, 64>}, {pipeline_mode = #tpu.pipeline_mode<synchronous>, transform_indices = @transform_4, window_bounds = array<i64: 64, 256>}, {pipeline_mode = #tpu.pipeline_mode<synchronous>, transform_indices = @transform_5, window_bounds = array<i64: 1, 256>}, {pipeline_mode = #tpu.pipeline_mode<synchronous>, transform_indices = @transform_6, window_bounds = array<i64: 48, 144>}, {pipeline_mode = #tpu.pipeline_mode<synchronous>, transform_indices = @transform_7, window_bounds = array<i64: 48, 1>}, {pipeline_mode = #tpu.pipeline_mode<synchronous>, transform_indices = @transform_8, window_bounds = array<i64: 16, 144>}, {pipeline_mode = #tpu.pipeline_mode<synchronous>, transform_indices = @transform_9, window_bounds = array<i64: 16, 1>}, {pipeline_mode = #tpu.pipeline_mode<synchronous>, transform_indices = @transform_10, window_bounds = array<i64: 16, 144>}, {pipeline_mode = #tpu.pipeline_mode<synchronous>, transform_indices = @transform_11, window_bounds = array<i64: 16, 1>}, {pipeline_mode = #tpu.pipeline_mode<synchronous>, transform_indices = @transform_12, window_bounds = array<i64: 16, 144>}, {pipeline_mode = #tpu.pipeline_mode<synchronous>, transform_indices = @transform_13, window_bounds = array<i64: 16, 1>}, {pipeline_mode = #tpu.pipeline_mode<synchronous>, transform_indices = @transform_14, window_bounds = array<i64: 16, 144>}, {pipeline_mode = #tpu.pipeline_mode<synchronous>, transform_indices = @transform_15, window_bounds = array<i64: 16, 1>}, {transform_indices = @transform_16, window_bounds = array<i64: 16, 256>}]} {
    %c0 = arith.constant 0 : index
    %c0_0 = arith.constant 0 : index
    %0 = vector.load %arg1[%c0, %c0_0] : memref<16x256xf32, #tpu.memory_space<vmem>>, vector<16x256xf32>
    %c0_1 = arith.constant 0 : index
    %c0_2 = arith.constant 0 : index
    %1 = vector.load %arg2[%c0_1, %c0_2] : memref<9x256xf32, #tpu.memory_space<vmem>>, vector<9x256xf32>
    %c0_3 = arith.constant 0 : index
    %c0_4 = arith.constant 0 : index
    %2 = vector.load %arg3[%c0_3, %c0_4] : memref<9x64xf32, #tpu.memory_space<vmem>>, vector<9x64xf32>
    %c0_5 = arith.constant 0 : index
    %c0_6 = arith.constant 0 : index
    %3 = vector.load %arg6[%c0_5, %c0_6] : memref<1x256xf32, #tpu.memory_space<vmem>>, vector<1x256xf32>
    %c17_i32 = arith.constant 17 : i32
    %4 = tpu.dynamic_rotate %0 by %c17_i32 dim 1 : vector<16x256xf32>, i32 -> vector<16x256xf32>
    %5 = vector.extract_strided_slice %1 {offsets = [0, 0], sizes = [1, 256], strides = [1, 1]} : vector<9x256xf32> to vector<1x256xf32>
    %6 = vector.broadcast %5 : vector<1x256xf32> to vector<16x256xf32>
    %7 = arith.mulf %4, %6 : vector<16x256xf32>
    %8 = arith.truncf %7 : vector<16x256xf32> to vector<16x256xbf16>
    %c16_i32 = arith.constant 16 : i32
    %9 = tpu.dynamic_rotate %0 by %c16_i32 dim 1 : vector<16x256xf32>, i32 -> vector<16x256xf32>
    %10 = vector.extract_strided_slice %1 {offsets = [1, 0], sizes = [1, 256], strides = [1, 1]} : vector<9x256xf32> to vector<1x256xf32>
    %11 = vector.broadcast %10 : vector<1x256xf32> to vector<16x256xf32>
    %12 = arith.mulf %9, %11 : vector<16x256xf32>
    %13 = arith.truncf %12 : vector<16x256xf32> to vector<16x256xbf16>
    %c15_i32 = arith.constant 15 : i32
    %14 = tpu.dynamic_rotate %0 by %c15_i32 dim 1 : vector<16x256xf32>, i32 -> vector<16x256xf32>
    %15 = vector.extract_strided_slice %1 {offsets = [2, 0], sizes = [1, 256], strides = [1, 1]} : vector<9x256xf32> to vector<1x256xf32>
    %16 = vector.broadcast %15 : vector<1x256xf32> to vector<16x256xf32>
    %17 = arith.mulf %14, %16 : vector<16x256xf32>
    %18 = arith.truncf %17 : vector<16x256xf32> to vector<16x256xbf16>
    %c1_i32 = arith.constant 1 : i32
    %19 = tpu.dynamic_rotate %0 by %c1_i32 dim 1 : vector<16x256xf32>, i32 -> vector<16x256xf32>
    %20 = vector.extract_strided_slice %1 {offsets = [3, 0], sizes = [1, 256], strides = [1, 1]} : vector<9x256xf32> to vector<1x256xf32>
    %21 = vector.broadcast %20 : vector<1x256xf32> to vector<16x256xf32>
    %22 = arith.mulf %19, %21 : vector<16x256xf32>
    %23 = arith.truncf %22 : vector<16x256xf32> to vector<16x256xbf16>
    %24 = arith.truncf %0 : vector<16x256xf32> to vector<16x256xbf16>
    %c255_i32 = arith.constant 255 : i32
    %25 = tpu.dynamic_rotate %0 by %c255_i32 dim 1 : vector<16x256xf32>, i32 -> vector<16x256xf32>
    %26 = vector.extract_strided_slice %1 {offsets = [5, 0], sizes = [1, 256], strides = [1, 1]} : vector<9x256xf32> to vector<1x256xf32>
    %27 = vector.broadcast %26 : vector<1x256xf32> to vector<16x256xf32>
    %28 = arith.mulf %25, %27 : vector<16x256xf32>
    %29 = arith.truncf %28 : vector<16x256xf32> to vector<16x256xbf16>
    %c241_i32 = arith.constant 241 : i32
    %30 = tpu.dynamic_rotate %0 by %c241_i32 dim 1 : vector<16x256xf32>, i32 -> vector<16x256xf32>
    %31 = vector.extract_strided_slice %1 {offsets = [6, 0], sizes = [1, 256], strides = [1, 1]} : vector<9x256xf32> to vector<1x256xf32>
    %32 = vector.broadcast %31 : vector<1x256xf32> to vector<16x256xf32>
    %33 = arith.mulf %30, %32 : vector<16x256xf32>
    %34 = arith.truncf %33 : vector<16x256xf32> to vector<16x256xbf16>
    %c240_i32 = arith.constant 240 : i32
    %35 = tpu.dynamic_rotate %0 by %c240_i32 dim 1 : vector<16x256xf32>, i32 -> vector<16x256xf32>
    %36 = vector.extract_strided_slice %1 {offsets = [7, 0], sizes = [1, 256], strides = [1, 1]} : vector<9x256xf32> to vector<1x256xf32>
    %37 = vector.broadcast %36 : vector<1x256xf32> to vector<16x256xf32>
    %38 = arith.mulf %35, %37 : vector<16x256xf32>
    %39 = arith.truncf %38 : vector<16x256xf32> to vector<16x256xbf16>
    %c239_i32 = arith.constant 239 : i32
    %40 = tpu.dynamic_rotate %0 by %c239_i32 dim 1 : vector<16x256xf32>, i32 -> vector<16x256xf32>
    %41 = vector.extract_strided_slice %1 {offsets = [8, 0], sizes = [1, 256], strides = [1, 1]} : vector<9x256xf32> to vector<1x256xf32>
    %42 = vector.broadcast %41 : vector<1x256xf32> to vector<16x256xf32>
    %43 = arith.mulf %40, %42 : vector<16x256xf32>
    %44 = arith.truncf %43 : vector<16x256xf32> to vector<16x256xbf16>
    %45 = tpu.concatenate %8, %13, %18, %23, %24, %29, %34, %39, %44 in 0 : vector<16x256xbf16>, vector<16x256xbf16>, vector<16x256xbf16>, vector<16x256xbf16>, vector<16x256xbf16>, vector<16x256xbf16>, vector<16x256xbf16>, vector<16x256xbf16>, vector<16x256xbf16> -> vector<144x256xbf16>
    %c0_7 = arith.constant 0 : index
    %c0_8 = arith.constant 0 : index
    %46 = vector.load %arg7[%c0_7, %c0_8] : memref<48x144xbf16, #tpu.memory_space<vmem>>, vector<48x144xbf16>
    %cst = arith.constant dense<0.000000e+00> : vector<48x256xf32>
    %47 = tpu.matmul %46, %45, %cst {dimension_numbers = #tpu.dot_dimension_numbers<[1], [0], [0], [1], [0, 0, 1, 1], [], []>} : vector<48x144xbf16>, vector<144x256xbf16>, vector<48x256xf32> -> vector<48x256xf32>
    %c0_9 = arith.constant 0 : index
    %c0_10 = arith.constant 0 : index
    %48 = vector.load %arg8[%c0_9, %c0_10] : memref<48x1xf32, #tpu.memory_space<vmem>>, vector<48x1xf32>
    %49 = vector.broadcast %48 : vector<48x1xf32> to vector<48x256xf32>
    %50 = arith.addf %47, %49 : vector<48x256xf32>
    %51 = vector.extract_strided_slice %50 {offsets = [32, 0], sizes = [16, 256], strides = [1, 1]} : vector<48x256xf32> to vector<16x256xf32>
    %cst_11 = arith.constant 0.000000e+00 : f32
    %52 = vector.broadcast %cst_11 : f32 to vector<16x256xf32>
    %53 = arith.maximumf %51, %52 : vector<16x256xf32>
    %54 = vector.extract_strided_slice %50 {offsets = [0, 0], sizes = [32, 256], strides = [1, 1]} : vector<48x256xf32> to vector<32x256xf32>
    %55 = arith.truncf %54 : vector<32x256xf32> to vector<32x256xbf16>
    %c0_12 = arith.constant 0 : index
    %c0_13 = arith.constant 0 : index
    %56 = vector.load %arg4[%c0_12, %c0_13] : memref<256x64xbf16, #tpu.memory_space<vmem>>, vector<256x64xbf16>
    %cst_14 = arith.constant dense<0.000000e+00> : vector<32x64xf32>
    %57 = tpu.matmul %55, %56, %cst_14 {dimension_numbers = #tpu.dot_dimension_numbers<[1], [0], [0], [1], [0, 0, 1, 1], [], []>} : vector<32x256xbf16>, vector<256x64xbf16>, vector<32x64xf32> -> vector<32x64xf32>
    %58 = vector.extract_strided_slice %57 {offsets = [0, 0], sizes = [16, 64], strides = [1, 1]} : vector<32x64xf32> to vector<16x64xf32>
    %cst_15 = arith.constant 0.000000e+00 : f32
    %59 = vector.broadcast %cst_15 : f32 to vector<16x64xf32>
    %60 = arith.maximumf %58, %59 : vector<16x64xf32>
    %61 = vector.extract_strided_slice %57 {offsets = [16, 0], sizes = [16, 64], strides = [1, 1]} : vector<32x64xf32> to vector<16x64xf32>
    %62 = vector.extract_strided_slice %60 {offsets = [0, 55], sizes = [16, 9], strides = [1, 1]} : vector<16x64xf32> to vector<16x9xf32>
    %63 = vector.extract_strided_slice %60 {offsets = [0, 0], sizes = [16, 55], strides = [1, 1]} : vector<16x64xf32> to vector<16x55xf32>
    %64 = tpu.concatenate %62, %63 in 1 : vector<16x9xf32>, vector<16x55xf32> -> vector<16x64xf32>
    %65 = vector.extract_strided_slice %2 {offsets = [0, 0], sizes = [1, 64], strides = [1, 1]} : vector<9x64xf32> to vector<1x64xf32>
    %66 = vector.broadcast %65 : vector<1x64xf32> to vector<16x64xf32>
    %67 = arith.mulf %64, %66 : vector<16x64xf32>
    %68 = arith.truncf %67 : vector<16x64xf32> to vector<16x64xbf16>
    %69 = vector.extract_strided_slice %60 {offsets = [0, 56], sizes = [16, 8], strides = [1, 1]} : vector<16x64xf32> to vector<16x8xf32>
    %70 = vector.extract_strided_slice %60 {offsets = [0, 0], sizes = [16, 56], strides = [1, 1]} : vector<16x64xf32> to vector<16x56xf32>
    %71 = tpu.concatenate %69, %70 in 1 : vector<16x8xf32>, vector<16x56xf32> -> vector<16x64xf32>
    %72 = vector.extract_strided_slice %2 {offsets = [1, 0], sizes = [1, 64], strides = [1, 1]} : vector<9x64xf32> to vector<1x64xf32>
    %73 = vector.broadcast %72 : vector<1x64xf32> to vector<16x64xf32>
    %74 = arith.mulf %71, %73 : vector<16x64xf32>
    %75 = arith.truncf %74 : vector<16x64xf32> to vector<16x64xbf16>
    %76 = vector.extract_strided_slice %60 {offsets = [0, 57], sizes = [16, 7], strides = [1, 1]} : vector<16x64xf32> to vector<16x7xf32>
    %77 = vector.extract_strided_slice %60 {offsets = [0, 0], sizes = [16, 57], strides = [1, 1]} : vector<16x64xf32> to vector<16x57xf32>
    %78 = tpu.concatenate %76, %77 in 1 : vector<16x7xf32>, vector<16x57xf32> -> vector<16x64xf32>
    %79 = vector.extract_strided_slice %2 {offsets = [2, 0], sizes = [1, 64], strides = [1, 1]} : vector<9x64xf32> to vector<1x64xf32>
    %80 = vector.broadcast %79 : vector<1x64xf32> to vector<16x64xf32>
    %81 = arith.mulf %78, %80 : vector<16x64xf32>
    %82 = arith.truncf %81 : vector<16x64xf32> to vector<16x64xbf16>
    %83 = vector.extract_strided_slice %60 {offsets = [0, 63], sizes = [16, 1], strides = [1, 1]} : vector<16x64xf32> to vector<16x1xf32>
    %84 = vector.extract_strided_slice %60 {offsets = [0, 0], sizes = [16, 63], strides = [1, 1]} : vector<16x64xf32> to vector<16x63xf32>
    %85 = tpu.concatenate %83, %84 in 1 : vector<16x1xf32>, vector<16x63xf32> -> vector<16x64xf32>
    %86 = vector.extract_strided_slice %2 {offsets = [3, 0], sizes = [1, 64], strides = [1, 1]} : vector<9x64xf32> to vector<1x64xf32>
    %87 = vector.broadcast %86 : vector<1x64xf32> to vector<16x64xf32>
    %88 = arith.mulf %85, %87 : vector<16x64xf32>
    %89 = arith.truncf %88 : vector<16x64xf32> to vector<16x64xbf16>
    %90 = arith.truncf %60 : vector<16x64xf32> to vector<16x64xbf16>
    %91 = vector.extract_strided_slice %60 {offsets = [0, 1], sizes = [16, 63], strides = [1, 1]} : vector<16x64xf32> to vector<16x63xf32>
    %92 = vector.extract_strided_slice %60 {offsets = [0, 0], sizes = [16, 1], strides = [1, 1]} : vector<16x64xf32> to vector<16x1xf32>
    %93 = tpu.concatenate %91, %92 in 1 : vector<16x63xf32>, vector<16x1xf32> -> vector<16x64xf32>
    %94 = vector.extract_strided_slice %2 {offsets = [5, 0], sizes = [1, 64], strides = [1, 1]} : vector<9x64xf32> to vector<1x64xf32>
    %95 = vector.broadcast %94 : vector<1x64xf32> to vector<16x64xf32>
    %96 = arith.mulf %93, %95 : vector<16x64xf32>
    %97 = arith.truncf %96 : vector<16x64xf32> to vector<16x64xbf16>
    %98 = vector.extract_strided_slice %60 {offsets = [0, 7], sizes = [16, 57], strides = [1, 1]} : vector<16x64xf32> to vector<16x57xf32>
    %99 = vector.extract_strided_slice %60 {offsets = [0, 0], sizes = [16, 7], strides = [1, 1]} : vector<16x64xf32> to vector<16x7xf32>
    %100 = tpu.concatenate %98, %99 in 1 : vector<16x57xf32>, vector<16x7xf32> -> vector<16x64xf32>
    %101 = vector.extract_strided_slice %2 {offsets = [6, 0], sizes = [1, 64], strides = [1, 1]} : vector<9x64xf32> to vector<1x64xf32>
    %102 = vector.broadcast %101 : vector<1x64xf32> to vector<16x64xf32>
    %103 = arith.mulf %100, %102 : vector<16x64xf32>
    %104 = arith.truncf %103 : vector<16x64xf32> to vector<16x64xbf16>
    %105 = vector.extract_strided_slice %60 {offsets = [0, 8], sizes = [16, 56], strides = [1, 1]} : vector<16x64xf32> to vector<16x56xf32>
    %106 = vector.extract_strided_slice %60 {offsets = [0, 0], sizes = [16, 8], strides = [1, 1]} : vector<16x64xf32> to vector<16x8xf32>
    %107 = tpu.concatenate %105, %106 in 1 : vector<16x56xf32>, vector<16x8xf32> -> vector<16x64xf32>
    %108 = vector.extract_strided_slice %2 {offsets = [7, 0], sizes = [1, 64], strides = [1, 1]} : vector<9x64xf32> to vector<1x64xf32>
    %109 = vector.broadcast %108 : vector<1x64xf32> to vector<16x64xf32>
    %110 = arith.mulf %107, %109 : vector<16x64xf32>
    %111 = arith.truncf %110 : vector<16x64xf32> to vector<16x64xbf16>
    %112 = vector.extract_strided_slice %60 {offsets = [0, 9], sizes = [16, 55], strides = [1, 1]} : vector<16x64xf32> to vector<16x55xf32>
    %113 = vector.extract_strided_slice %60 {offsets = [0, 0], sizes = [16, 9], strides = [1, 1]} : vector<16x64xf32> to vector<16x9xf32>
    %114 = tpu.concatenate %112, %113 in 1 : vector<16x55xf32>, vector<16x9xf32> -> vector<16x64xf32>
    %115 = vector.extract_strided_slice %2 {offsets = [8, 0], sizes = [1, 64], strides = [1, 1]} : vector<9x64xf32> to vector<1x64xf32>
    %116 = vector.broadcast %115 : vector<1x64xf32> to vector<16x64xf32>
    %117 = arith.mulf %114, %116 : vector<16x64xf32>
    %118 = arith.truncf %117 : vector<16x64xf32> to vector<16x64xbf16>
    %119 = tpu.concatenate %68, %75, %82, %89, %90, %97, %104, %111, %118 in 0 : vector<16x64xbf16>, vector<16x64xbf16>, vector<16x64xbf16>, vector<16x64xbf16>, vector<16x64xbf16>, vector<16x64xbf16>, vector<16x64xbf16>, vector<16x64xbf16>, vector<16x64xbf16> -> vector<144x64xbf16>
    %c0_16 = arith.constant 0 : index
    %c0_17 = arith.constant 0 : index
    %120 = vector.load %arg9[%c0_16, %c0_17] : memref<16x144xbf16, #tpu.memory_space<vmem>>, vector<16x144xbf16>
    %cst_18 = arith.constant dense<0.000000e+00> : vector<16x64xf32>
    %121 = tpu.matmul %120, %119, %cst_18 {dimension_numbers = #tpu.dot_dimension_numbers<[1], [0], [0], [1], [0, 0, 1, 1], [], []>} : vector<16x144xbf16>, vector<144x64xbf16>, vector<16x64xf32> -> vector<16x64xf32>
    %c0_19 = arith.constant 0 : index
    %c0_20 = arith.constant 0 : index
    %122 = vector.load %arg10[%c0_19, %c0_20] : memref<16x1xf32, #tpu.memory_space<vmem>>, vector<16x1xf32>
    %123 = vector.broadcast %122 : vector<16x1xf32> to vector<16x64xf32>
    %124 = arith.addf %121, %123 : vector<16x64xf32>
    %125 = arith.addf %124, %61 : vector<16x64xf32>
    %cst_21 = arith.constant 0.000000e+00 : f32
    %126 = vector.broadcast %cst_21 : f32 to vector<16x64xf32>
    %127 = arith.maximumf %125, %126 : vector<16x64xf32>
    %c17_i32_22 = arith.constant 17 : i32
    %128 = tpu.dynamic_rotate %53 by %c17_i32_22 dim 1 : vector<16x256xf32>, i32 -> vector<16x256xf32>
    %129 = vector.extract_strided_slice %1 {offsets = [0, 0], sizes = [1, 256], strides = [1, 1]} : vector<9x256xf32> to vector<1x256xf32>
    %130 = vector.broadcast %129 : vector<1x256xf32> to vector<16x256xf32>
    %131 = arith.mulf %128, %130 : vector<16x256xf32>
    %132 = arith.truncf %131 : vector<16x256xf32> to vector<16x256xbf16>
    %c16_i32_23 = arith.constant 16 : i32
    %133 = tpu.dynamic_rotate %53 by %c16_i32_23 dim 1 : vector<16x256xf32>, i32 -> vector<16x256xf32>
    %134 = vector.extract_strided_slice %1 {offsets = [1, 0], sizes = [1, 256], strides = [1, 1]} : vector<9x256xf32> to vector<1x256xf32>
    %135 = vector.broadcast %134 : vector<1x256xf32> to vector<16x256xf32>
    %136 = arith.mulf %133, %135 : vector<16x256xf32>
    %137 = arith.truncf %136 : vector<16x256xf32> to vector<16x256xbf16>
    %c15_i32_24 = arith.constant 15 : i32
    %138 = tpu.dynamic_rotate %53 by %c15_i32_24 dim 1 : vector<16x256xf32>, i32 -> vector<16x256xf32>
    %139 = vector.extract_strided_slice %1 {offsets = [2, 0], sizes = [1, 256], strides = [1, 1]} : vector<9x256xf32> to vector<1x256xf32>
    %140 = vector.broadcast %139 : vector<1x256xf32> to vector<16x256xf32>
    %141 = arith.mulf %138, %140 : vector<16x256xf32>
    %142 = arith.truncf %141 : vector<16x256xf32> to vector<16x256xbf16>
    %c1_i32_25 = arith.constant 1 : i32
    %143 = tpu.dynamic_rotate %53 by %c1_i32_25 dim 1 : vector<16x256xf32>, i32 -> vector<16x256xf32>
    %144 = vector.extract_strided_slice %1 {offsets = [3, 0], sizes = [1, 256], strides = [1, 1]} : vector<9x256xf32> to vector<1x256xf32>
    %145 = vector.broadcast %144 : vector<1x256xf32> to vector<16x256xf32>
    %146 = arith.mulf %143, %145 : vector<16x256xf32>
    %147 = arith.truncf %146 : vector<16x256xf32> to vector<16x256xbf16>
    %148 = arith.truncf %53 : vector<16x256xf32> to vector<16x256xbf16>
    %c255_i32_26 = arith.constant 255 : i32
    %149 = tpu.dynamic_rotate %53 by %c255_i32_26 dim 1 : vector<16x256xf32>, i32 -> vector<16x256xf32>
    %150 = vector.extract_strided_slice %1 {offsets = [5, 0], sizes = [1, 256], strides = [1, 1]} : vector<9x256xf32> to vector<1x256xf32>
    %151 = vector.broadcast %150 : vector<1x256xf32> to vector<16x256xf32>
    %152 = arith.mulf %149, %151 : vector<16x256xf32>
    %153 = arith.truncf %152 : vector<16x256xf32> to vector<16x256xbf16>
    %c241_i32_27 = arith.constant 241 : i32
    %154 = tpu.dynamic_rotate %53 by %c241_i32_27 dim 1 : vector<16x256xf32>, i32 -> vector<16x256xf32>
    %155 = vector.extract_strided_slice %1 {offsets = [6, 0], sizes = [1, 256], strides = [1, 1]} : vector<9x256xf32> to vector<1x256xf32>
    %156 = vector.broadcast %155 : vector<1x256xf32> to vector<16x256xf32>
    %157 = arith.mulf %154, %156 : vector<16x256xf32>
    %158 = arith.truncf %157 : vector<16x256xf32> to vector<16x256xbf16>
    %c240_i32_28 = arith.constant 240 : i32
    %159 = tpu.dynamic_rotate %53 by %c240_i32_28 dim 1 : vector<16x256xf32>, i32 -> vector<16x256xf32>
    %160 = vector.extract_strided_slice %1 {offsets = [7, 0], sizes = [1, 256], strides = [1, 1]} : vector<9x256xf32> to vector<1x256xf32>
    %161 = vector.broadcast %160 : vector<1x256xf32> to vector<16x256xf32>
    %162 = arith.mulf %159, %161 : vector<16x256xf32>
    %163 = arith.truncf %162 : vector<16x256xf32> to vector<16x256xbf16>
    %c239_i32_29 = arith.constant 239 : i32
    %164 = tpu.dynamic_rotate %53 by %c239_i32_29 dim 1 : vector<16x256xf32>, i32 -> vector<16x256xf32>
    %165 = vector.extract_strided_slice %1 {offsets = [8, 0], sizes = [1, 256], strides = [1, 1]} : vector<9x256xf32> to vector<1x256xf32>
    %166 = vector.broadcast %165 : vector<1x256xf32> to vector<16x256xf32>
    %167 = arith.mulf %164, %166 : vector<16x256xf32>
    %168 = arith.truncf %167 : vector<16x256xf32> to vector<16x256xbf16>
    %169 = tpu.concatenate %132, %137, %142, %147, %148, %153, %158, %163, %168 in 0 : vector<16x256xbf16>, vector<16x256xbf16>, vector<16x256xbf16>, vector<16x256xbf16>, vector<16x256xbf16>, vector<16x256xbf16>, vector<16x256xbf16>, vector<16x256xbf16>, vector<16x256xbf16> -> vector<144x256xbf16>
    %c0_30 = arith.constant 0 : index
    %c0_31 = arith.constant 0 : index
    %170 = vector.load %arg11[%c0_30, %c0_31] : memref<16x144xbf16, #tpu.memory_space<vmem>>, vector<16x144xbf16>
    %cst_32 = arith.constant dense<0.000000e+00> : vector<16x256xf32>
    %171 = tpu.matmul %170, %169, %cst_32 {dimension_numbers = #tpu.dot_dimension_numbers<[1], [0], [0], [1], [0, 0, 1, 1], [], []>} : vector<16x144xbf16>, vector<144x256xbf16>, vector<16x256xf32> -> vector<16x256xf32>
    %c0_33 = arith.constant 0 : index
    %c0_34 = arith.constant 0 : index
    %172 = vector.load %arg12[%c0_33, %c0_34] : memref<16x1xf32, #tpu.memory_space<vmem>>, vector<16x1xf32>
    %173 = vector.broadcast %172 : vector<16x1xf32> to vector<16x256xf32>
    %174 = arith.addf %171, %173 : vector<16x256xf32>
    %175 = vector.broadcast %3 : vector<1x256xf32> to vector<16x256xf32>
    %176 = arith.mulf %174, %175 : vector<16x256xf32>
    %177 = arith.addf %176, %0 : vector<16x256xf32>
    %cst_35 = arith.constant 0.000000e+00 : f32
    %178 = vector.broadcast %cst_35 : f32 to vector<16x256xf32>
    %179 = arith.maximumf %177, %178 : vector<16x256xf32>
    %180 = arith.truncf %127 : vector<16x64xf32> to vector<16x64xbf16>
    %c0_36 = arith.constant 0 : index
    %c0_37 = arith.constant 0 : index
    %181 = vector.load %arg5[%c0_36, %c0_37] : memref<64x256xbf16, #tpu.memory_space<vmem>>, vector<64x256xbf16>
    %cst_38 = arith.constant dense<0.000000e+00> : vector<16x256xf32>
    %182 = tpu.matmul %180, %181, %cst_38 {dimension_numbers = #tpu.dot_dimension_numbers<[1], [0], [0], [1], [0, 0, 1, 1], [], []>} : vector<16x64xbf16>, vector<64x256xbf16>, vector<16x256xf32> -> vector<16x256xf32>
    %183 = arith.addf %182, %179 : vector<16x256xf32>
    %cst_39 = arith.constant 0.000000e+00 : f32
    %184 = vector.broadcast %cst_39 : f32 to vector<16x256xf32>
    %185 = arith.maximumf %183, %184 : vector<16x256xf32>
    %c17_i32_40 = arith.constant 17 : i32
    %186 = tpu.dynamic_rotate %185 by %c17_i32_40 dim 1 : vector<16x256xf32>, i32 -> vector<16x256xf32>
    %187 = vector.extract_strided_slice %1 {offsets = [0, 0], sizes = [1, 256], strides = [1, 1]} : vector<9x256xf32> to vector<1x256xf32>
    %188 = vector.broadcast %187 : vector<1x256xf32> to vector<16x256xf32>
    %189 = arith.mulf %186, %188 : vector<16x256xf32>
    %190 = arith.truncf %189 : vector<16x256xf32> to vector<16x256xbf16>
    %c16_i32_41 = arith.constant 16 : i32
    %191 = tpu.dynamic_rotate %185 by %c16_i32_41 dim 1 : vector<16x256xf32>, i32 -> vector<16x256xf32>
    %192 = vector.extract_strided_slice %1 {offsets = [1, 0], sizes = [1, 256], strides = [1, 1]} : vector<9x256xf32> to vector<1x256xf32>
    %193 = vector.broadcast %192 : vector<1x256xf32> to vector<16x256xf32>
    %194 = arith.mulf %191, %193 : vector<16x256xf32>
    %195 = arith.truncf %194 : vector<16x256xf32> to vector<16x256xbf16>
    %c15_i32_42 = arith.constant 15 : i32
    %196 = tpu.dynamic_rotate %185 by %c15_i32_42 dim 1 : vector<16x256xf32>, i32 -> vector<16x256xf32>
    %197 = vector.extract_strided_slice %1 {offsets = [2, 0], sizes = [1, 256], strides = [1, 1]} : vector<9x256xf32> to vector<1x256xf32>
    %198 = vector.broadcast %197 : vector<1x256xf32> to vector<16x256xf32>
    %199 = arith.mulf %196, %198 : vector<16x256xf32>
    %200 = arith.truncf %199 : vector<16x256xf32> to vector<16x256xbf16>
    %c1_i32_43 = arith.constant 1 : i32
    %201 = tpu.dynamic_rotate %185 by %c1_i32_43 dim 1 : vector<16x256xf32>, i32 -> vector<16x256xf32>
    %202 = vector.extract_strided_slice %1 {offsets = [3, 0], sizes = [1, 256], strides = [1, 1]} : vector<9x256xf32> to vector<1x256xf32>
    %203 = vector.broadcast %202 : vector<1x256xf32> to vector<16x256xf32>
    %204 = arith.mulf %201, %203 : vector<16x256xf32>
    %205 = arith.truncf %204 : vector<16x256xf32> to vector<16x256xbf16>
    %206 = arith.truncf %185 : vector<16x256xf32> to vector<16x256xbf16>
    %c255_i32_44 = arith.constant 255 : i32
    %207 = tpu.dynamic_rotate %185 by %c255_i32_44 dim 1 : vector<16x256xf32>, i32 -> vector<16x256xf32>
    %208 = vector.extract_strided_slice %1 {offsets = [5, 0], sizes = [1, 256], strides = [1, 1]} : vector<9x256xf32> to vector<1x256xf32>
    %209 = vector.broadcast %208 : vector<1x256xf32> to vector<16x256xf32>
    %210 = arith.mulf %207, %209 : vector<16x256xf32>
    %211 = arith.truncf %210 : vector<16x256xf32> to vector<16x256xbf16>
    %c241_i32_45 = arith.constant 241 : i32
    %212 = tpu.dynamic_rotate %185 by %c241_i32_45 dim 1 : vector<16x256xf32>, i32 -> vector<16x256xf32>
    %213 = vector.extract_strided_slice %1 {offsets = [6, 0], sizes = [1, 256], strides = [1, 1]} : vector<9x256xf32> to vector<1x256xf32>
    %214 = vector.broadcast %213 : vector<1x256xf32> to vector<16x256xf32>
    %215 = arith.mulf %212, %214 : vector<16x256xf32>
    %216 = arith.truncf %215 : vector<16x256xf32> to vector<16x256xbf16>
    %c240_i32_46 = arith.constant 240 : i32
    %217 = tpu.dynamic_rotate %185 by %c240_i32_46 dim 1 : vector<16x256xf32>, i32 -> vector<16x256xf32>
    %218 = vector.extract_strided_slice %1 {offsets = [7, 0], sizes = [1, 256], strides = [1, 1]} : vector<9x256xf32> to vector<1x256xf32>
    %219 = vector.broadcast %218 : vector<1x256xf32> to vector<16x256xf32>
    %220 = arith.mulf %217, %219 : vector<16x256xf32>
    %221 = arith.truncf %220 : vector<16x256xf32> to vector<16x256xbf16>
    %c239_i32_47 = arith.constant 239 : i32
    %222 = tpu.dynamic_rotate %185 by %c239_i32_47 dim 1 : vector<16x256xf32>, i32 -> vector<16x256xf32>
    %223 = vector.extract_strided_slice %1 {offsets = [8, 0], sizes = [1, 256], strides = [1, 1]} : vector<9x256xf32> to vector<1x256xf32>
    %224 = vector.broadcast %223 : vector<1x256xf32> to vector<16x256xf32>
    %225 = arith.mulf %222, %224 : vector<16x256xf32>
    %226 = arith.truncf %225 : vector<16x256xf32> to vector<16x256xbf16>
    %227 = tpu.concatenate %190, %195, %200, %205, %206, %211, %216, %221, %226 in 0 : vector<16x256xbf16>, vector<16x256xbf16>, vector<16x256xbf16>, vector<16x256xbf16>, vector<16x256xbf16>, vector<16x256xbf16>, vector<16x256xbf16>, vector<16x256xbf16>, vector<16x256xbf16> -> vector<144x256xbf16>
    %c0_48 = arith.constant 0 : index
    %c0_49 = arith.constant 0 : index
    %228 = vector.load %arg13[%c0_48, %c0_49] : memref<16x144xbf16, #tpu.memory_space<vmem>>, vector<16x144xbf16>
    %cst_50 = arith.constant dense<0.000000e+00> : vector<16x256xf32>
    %229 = tpu.matmul %228, %227, %cst_50 {dimension_numbers = #tpu.dot_dimension_numbers<[1], [0], [0], [1], [0, 0, 1, 1], [], []>} : vector<16x144xbf16>, vector<144x256xbf16>, vector<16x256xf32> -> vector<16x256xf32>
    %c0_51 = arith.constant 0 : index
    %c0_52 = arith.constant 0 : index
    %230 = vector.load %arg14[%c0_51, %c0_52] : memref<16x1xf32, #tpu.memory_space<vmem>>, vector<16x1xf32>
    %231 = vector.broadcast %230 : vector<16x1xf32> to vector<16x256xf32>
    %232 = arith.addf %229, %231 : vector<16x256xf32>
    %cst_53 = arith.constant 0.000000e+00 : f32
    %233 = vector.broadcast %cst_53 : f32 to vector<16x256xf32>
    %234 = arith.maximumf %232, %233 : vector<16x256xf32>
    %c17_i32_54 = arith.constant 17 : i32
    %235 = tpu.dynamic_rotate %234 by %c17_i32_54 dim 1 : vector<16x256xf32>, i32 -> vector<16x256xf32>
    %236 = vector.extract_strided_slice %1 {offsets = [0, 0], sizes = [1, 256], strides = [1, 1]} : vector<9x256xf32> to vector<1x256xf32>
    %237 = vector.broadcast %236 : vector<1x256xf32> to vector<16x256xf32>
    %238 = arith.mulf %235, %237 : vector<16x256xf32>
    %239 = arith.truncf %238 : vector<16x256xf32> to vector<16x256xbf16>
    %c16_i32_55 = arith.constant 16 : i32
    %240 = tpu.dynamic_rotate %234 by %c16_i32_55 dim 1 : vector<16x256xf32>, i32 -> vector<16x256xf32>
    %241 = vector.extract_strided_slice %1 {offsets = [1, 0], sizes = [1, 256], strides = [1, 1]} : vector<9x256xf32> to vector<1x256xf32>
    %242 = vector.broadcast %241 : vector<1x256xf32> to vector<16x256xf32>
    %243 = arith.mulf %240, %242 : vector<16x256xf32>
    %244 = arith.truncf %243 : vector<16x256xf32> to vector<16x256xbf16>
    %c15_i32_56 = arith.constant 15 : i32
    %245 = tpu.dynamic_rotate %234 by %c15_i32_56 dim 1 : vector<16x256xf32>, i32 -> vector<16x256xf32>
    %246 = vector.extract_strided_slice %1 {offsets = [2, 0], sizes = [1, 256], strides = [1, 1]} : vector<9x256xf32> to vector<1x256xf32>
    %247 = vector.broadcast %246 : vector<1x256xf32> to vector<16x256xf32>
    %248 = arith.mulf %245, %247 : vector<16x256xf32>
    %249 = arith.truncf %248 : vector<16x256xf32> to vector<16x256xbf16>
    %c1_i32_57 = arith.constant 1 : i32
    %250 = tpu.dynamic_rotate %234 by %c1_i32_57 dim 1 : vector<16x256xf32>, i32 -> vector<16x256xf32>
    %251 = vector.extract_strided_slice %1 {offsets = [3, 0], sizes = [1, 256], strides = [1, 1]} : vector<9x256xf32> to vector<1x256xf32>
    %252 = vector.broadcast %251 : vector<1x256xf32> to vector<16x256xf32>
    %253 = arith.mulf %250, %252 : vector<16x256xf32>
    %254 = arith.truncf %253 : vector<16x256xf32> to vector<16x256xbf16>
    %255 = arith.truncf %234 : vector<16x256xf32> to vector<16x256xbf16>
    %c255_i32_58 = arith.constant 255 : i32
    %256 = tpu.dynamic_rotate %234 by %c255_i32_58 dim 1 : vector<16x256xf32>, i32 -> vector<16x256xf32>
    %257 = vector.extract_strided_slice %1 {offsets = [5, 0], sizes = [1, 256], strides = [1, 1]} : vector<9x256xf32> to vector<1x256xf32>
    %258 = vector.broadcast %257 : vector<1x256xf32> to vector<16x256xf32>
    %259 = arith.mulf %256, %258 : vector<16x256xf32>
    %260 = arith.truncf %259 : vector<16x256xf32> to vector<16x256xbf16>
    %c241_i32_59 = arith.constant 241 : i32
    %261 = tpu.dynamic_rotate %234 by %c241_i32_59 dim 1 : vector<16x256xf32>, i32 -> vector<16x256xf32>
    %262 = vector.extract_strided_slice %1 {offsets = [6, 0], sizes = [1, 256], strides = [1, 1]} : vector<9x256xf32> to vector<1x256xf32>
    %263 = vector.broadcast %262 : vector<1x256xf32> to vector<16x256xf32>
    %264 = arith.mulf %261, %263 : vector<16x256xf32>
    %265 = arith.truncf %264 : vector<16x256xf32> to vector<16x256xbf16>
    %c240_i32_60 = arith.constant 240 : i32
    %266 = tpu.dynamic_rotate %234 by %c240_i32_60 dim 1 : vector<16x256xf32>, i32 -> vector<16x256xf32>
    %267 = vector.extract_strided_slice %1 {offsets = [7, 0], sizes = [1, 256], strides = [1, 1]} : vector<9x256xf32> to vector<1x256xf32>
    %268 = vector.broadcast %267 : vector<1x256xf32> to vector<16x256xf32>
    %269 = arith.mulf %266, %268 : vector<16x256xf32>
    %270 = arith.truncf %269 : vector<16x256xf32> to vector<16x256xbf16>
    %c239_i32_61 = arith.constant 239 : i32
    %271 = tpu.dynamic_rotate %234 by %c239_i32_61 dim 1 : vector<16x256xf32>, i32 -> vector<16x256xf32>
    %272 = vector.extract_strided_slice %1 {offsets = [8, 0], sizes = [1, 256], strides = [1, 1]} : vector<9x256xf32> to vector<1x256xf32>
    %273 = vector.broadcast %272 : vector<1x256xf32> to vector<16x256xf32>
    %274 = arith.mulf %271, %273 : vector<16x256xf32>
    %275 = arith.truncf %274 : vector<16x256xf32> to vector<16x256xbf16>
    %276 = tpu.concatenate %239, %244, %249, %254, %255, %260, %265, %270, %275 in 0 : vector<16x256xbf16>, vector<16x256xbf16>, vector<16x256xbf16>, vector<16x256xbf16>, vector<16x256xbf16>, vector<16x256xbf16>, vector<16x256xbf16>, vector<16x256xbf16>, vector<16x256xbf16> -> vector<144x256xbf16>
    %c0_62 = arith.constant 0 : index
    %c0_63 = arith.constant 0 : index
    %277 = vector.load %arg15[%c0_62, %c0_63] : memref<16x144xbf16, #tpu.memory_space<vmem>>, vector<16x144xbf16>
    %cst_64 = arith.constant dense<0.000000e+00> : vector<16x256xf32>
    %278 = tpu.matmul %277, %276, %cst_64 {dimension_numbers = #tpu.dot_dimension_numbers<[1], [0], [0], [1], [0, 0, 1, 1], [], []>} : vector<16x144xbf16>, vector<144x256xbf16>, vector<16x256xf32> -> vector<16x256xf32>
    %c0_65 = arith.constant 0 : index
    %c0_66 = arith.constant 0 : index
    %279 = vector.load %arg16[%c0_65, %c0_66] : memref<16x1xf32, #tpu.memory_space<vmem>>, vector<16x1xf32>
    %280 = vector.broadcast %279 : vector<16x1xf32> to vector<16x256xf32>
    %281 = arith.addf %278, %280 : vector<16x256xf32>
    %282 = arith.addf %281, %185 : vector<16x256xf32>
    %cst_67 = arith.constant 0.000000e+00 : f32
    %283 = vector.broadcast %cst_67 : f32 to vector<16x256xf32>
    %284 = arith.maximumf %282, %283 : vector<16x256xf32>
    %c0_68 = arith.constant 0 : index
    %c0_69 = arith.constant 0 : index
    %285 = vector.load %arg17[%c0_68, %c0_69] : memref<16x256xf32, #tpu.memory_space<vmem>>, vector<16x256xf32>
    tpu.vector_store %arg17[%c0_68, %c0_69], %284 {strides = array<i32>} : memref<16x256xf32, #tpu.memory_space<vmem>>, vector<16x256xf32>,
    return
  }
  func.func @transform_0(%arg0: i32) -> (i32, i32) {
    %c0_i32 = arith.constant 0 : i32
    %c0_i32_0 = arith.constant 0 : i32
    return %arg0, %c0_i32 : i32, i32
  }
  func.func @transform_1(%arg0: i32) -> (i32, i32) {
    %c0_i32 = arith.constant 0 : i32
    %c0_i32_0 = arith.constant 0 : i32
    %c0_i32_1 = arith.constant 0 : i32
    return %c0_i32, %c0_i32_0 : i32, i32
  }
  func.func @transform_2(%arg0: i32) -> (i32, i32) {
    %c0_i32 = arith.constant 0 : i32
    %c0_i32_0 = arith.constant 0 : i32
    %c0_i32_1 = arith.constant 0 : i32
    return %c0_i32, %c0_i32_0 : i32, i32
  }
  func.func @transform_3(%arg0: i32) -> (i32, i32) {
    %c0_i32 = arith.constant 0 : i32
    %c0_i32_0 = arith.constant 0 : i32
    %c0_i32_1 = arith.constant 0 : i32
    return %c0_i32, %c0_i32_0 : i32, i32
  }
  func.func @transform_4(%arg0: i32) -> (i32, i32) {
    %c0_i32 = arith.constant 0 : i32
    %c0_i32_0 = arith.constant 0 : i32
    %c0_i32_1 = arith.constant 0 : i32
    return %c0_i32, %c0_i32_0 : i32, i32
  }
  func.func @transform_5(%arg0: i32) -> (i32, i32) {
    %c0_i32 = arith.constant 0 : i32
    %c0_i32_0 = arith.constant 0 : i32
    %c0_i32_1 = arith.constant 0 : i32
    return %c0_i32, %c0_i32_0 : i32, i32
  }
  func.func @transform_6(%arg0: i32) -> (i32, i32) {
    %c0_i32 = arith.constant 0 : i32
    %c0_i32_0 = arith.constant 0 : i32
    %c0_i32_1 = arith.constant 0 : i32
    return %c0_i32, %c0_i32_0 : i32, i32
  }
  func.func @transform_7(%arg0: i32) -> (i32, i32) {
    %c0_i32 = arith.constant 0 : i32
    %c0_i32_0 = arith.constant 0 : i32
    %c0_i32_1 = arith.constant 0 : i32
    return %c0_i32, %c0_i32_0 : i32, i32
  }
  func.func @transform_8(%arg0: i32) -> (i32, i32) {
    %c0_i32 = arith.constant 0 : i32
    %c0_i32_0 = arith.constant 0 : i32
    %c0_i32_1 = arith.constant 0 : i32
    return %c0_i32, %c0_i32_0 : i32, i32
  }
  func.func @transform_9(%arg0: i32) -> (i32, i32) {
    %c0_i32 = arith.constant 0 : i32
    %c0_i32_0 = arith.constant 0 : i32
    %c0_i32_1 = arith.constant 0 : i32
    return %c0_i32, %c0_i32_0 : i32, i32
  }
  func.func @transform_10(%arg0: i32) -> (i32, i32) {
    %c0_i32 = arith.constant 0 : i32
    %c0_i32_0 = arith.constant 0 : i32
    %c0_i32_1 = arith.constant 0 : i32
    return %c0_i32, %c0_i32_0 : i32, i32
  }
  func.func @transform_11(%arg0: i32) -> (i32, i32) {
    %c0_i32 = arith.constant 0 : i32
    %c0_i32_0 = arith.constant 0 : i32
    %c0_i32_1 = arith.constant 0 : i32
    return %c0_i32, %c0_i32_0 : i32, i32
  }
  func.func @transform_12(%arg0: i32) -> (i32, i32) {
    %c0_i32 = arith.constant 0 : i32
    %c0_i32_0 = arith.constant 0 : i32
    %c0_i32_1 = arith.constant 0 : i32
    return %c0_i32, %c0_i32_0 : i32, i32
  }
  func.func @transform_13(%arg0: i32) -> (i32, i32) {
    %c0_i32 = arith.constant 0 : i32
    %c0_i32_0 = arith.constant 0 : i32
    %c0_i32_1 = arith.constant 0 : i32
    return %c0_i32, %c0_i32_0 : i32, i32
  }
  func.func @transform_14(%arg0: i32) -> (i32, i32) {
    %c0_i32 = arith.constant 0 : i32
    %c0_i32_0 = arith.constant 0 : i32
    %c0_i32_1 = arith.constant 0 : i32
    return %c0_i32, %c0_i32_0 : i32, i32
  }
  func.func @transform_15(%arg0: i32) -> (i32, i32) {
    %c0_i32 = arith.constant 0 : i32
    %c0_i32_0 = arith.constant 0 : i32
    %c0_i32_1 = arith.constant 0 : i32
    return %c0_i32, %c0_i32_0 : i32, i32
  }
  func.func @transform_16(%arg0: i32) -> (i32, i32) {
    %c0_i32 = arith.constant 0 : i32
    %c0_i32_0 = arith.constant 0 : i32
    return %arg0, %c0_i32 : i32, i32
  }
}

</mosaic_0001>

<llo_original>
// kernel: sar_module_forward.1
$region0: #{sar_module_forward.1}
  #allocation0 [shape = 'u32[]', space=smem, size = 0x4, offset = 0x4, fixed_abs, tag = 'smem constant byte address 0x4 - core index']
  #allocation1 [shape = 'u32[144,128]{1,0:T(1,128)}', space=vmem, size = 0x12000, scoped, tag = 'internal scratch']
  %s0 = inlined_call_operand.vmem [shape: f32[32,256], index: 0, kind: input, shape index: {}]
  %s1 = inlined_call_operand.vmem [shape: f32[9,256], index: 1, kind: input, shape index: {}]
  %s2 = inlined_call_operand.vmem [shape: f32[9,64], index: 2, kind: input, shape index: {}]
  %s3 = inlined_call_operand.vmem [shape: bf16[256,64], index: 3, kind: input, shape index: {}]
  %s4 = inlined_call_operand.vmem [shape: bf16[64,256], index: 4, kind: input, shape index: {}]
  %s5 = inlined_call_operand.vmem [shape: f32[1,256], index: 5, kind: input, shape index: {}]
  %s6 = inlined_call_operand.vmem [shape: bf16[48,144], index: 6, kind: input, shape index: {}]
  %s7 = inlined_call_operand.vmem [shape: f32[48,1], index: 7, kind: input, shape index: {}]
  %s8 = inlined_call_operand.vmem [shape: bf16[16,144], index: 8, kind: input, shape index: {}]
  %s9 = inlined_call_operand.vmem [shape: f32[16,1], index: 9, kind: input, shape index: {}]
  %s10 = inlined_call_operand.vmem [shape: bf16[16,144], index: 10, kind: input, shape index: {}]
  %s11 = inlined_call_operand.vmem [shape: f32[16,1], index: 11, kind: input, shape index: {}]
  %s12 = inlined_call_operand.vmem [shape: bf16[16,144], index: 12, kind: input, shape index: {}]
  %s13 = inlined_call_operand.vmem [shape: f32[16,1], index: 13, kind: input, shape index: {}]
  %s14 = inlined_call_operand.vmem [shape: bf16[16,144], index: 14, kind: input, shape index: {}]
  %s15 = inlined_call_operand.vmem [shape: f32[16,1], index: 15, kind: input, shape index: {}]
  %s16 = inlined_call_operand.vmem [shape: f32[32,256], index: 16, kind: output, shape index: {}]
  %s17 = sld [smem:[#allocation0]]
  $region97: #{sar_module_forward.1} parent=0
    _
  %s19 = ssub.s32 1, %s17
  %s20 = scalar_select 0, %s19, %s17
  loop: start=0, step=1, limit=4
  $region2: #{sar_module_forward.1} parent=0 // loop_pre_header
    _
  $region3: #{sar_module_forward.1} parent=0 // loop_header
    %s22 = sphi 0, %s26
    %p23 = scmp.ge.s32.totalorder %s22, 4
    %s32 = sphi 0, %s34
    %s35 = sphi 0, %s32
    %s36 = sphi 0, %s35
    %s52 = sphi 0, %s36
    %s56 = sphi 0, %s56
    %s58 = sphi 0, %s56
    %s59 = sphi 0, %s58
    %s73 = sphi 0, %s59
    %s77 = sphi 0, %s77
    %s79 = sphi 0, %s77
    %s80 = sphi 0, %s79
    %s94 = sphi 0, %s80
    %s98 = sphi 0, %s98
    %s100 = sphi 0, %s98
    %s101 = sphi 0, %s100
    %s115 = sphi 0, %s101
    %s119 = sphi 0, %s119
    %s121 = sphi 0, %s119
    %s122 = sphi 0, %s121
    %s136 = sphi 0, %s122
    %s140 = sphi 0, %s140
    %s142 = sphi 0, %s140
    %s143 = sphi 0, %s142
    %s157 = sphi 0, %s143
    %s161 = sphi 0, %s161
    %s163 = sphi 0, %s161
    %s164 = sphi 0, %s163
    %s178 = sphi 0, %s164
    %s182 = sphi 0, %s182
    %s184 = sphi 0, %s182
    %s185 = sphi 0, %s184
    %s199 = sphi 0, %s185
    %s203 = sphi 0, %s203
    %s205 = sphi 0, %s203
    %s206 = sphi 0, %s205
    %s220 = sphi 0, %s206
    %s224 = sphi 0, %s224
    %s226 = sphi 0, %s224
    %s227 = sphi 0, %s226
    %s241 = sphi 0, %s227
    %s245 = sphi 0, %s245
    %s247 = sphi 0, %s245
    %s248 = sphi 0, %s247
    %s262 = sphi 0, %s248
    %s266 = sphi 0, %s266
    %s268 = sphi 0, %s266
    %s269 = sphi 0, %s268
    %s283 = sphi 0, %s269
    %s287 = sphi 0, %s287
    %s289 = sphi 0, %s287
    %s290 = sphi 0, %s289
    %s304 = sphi 0, %s290
    %s308 = sphi 0, %s308
    %s310 = sphi 0, %s308
    %s311 = sphi 0, %s310
    %s325 = sphi 0, %s311
    %s329 = sphi 0, %s329
    %s331 = sphi 0, %s329
    %s332 = sphi 0, %s331
    %s346 = sphi 0, %s332
    %s350 = sphi 0, %s350
    %s352 = sphi 0, %s350
    %s353 = sphi 0, %s352
    %s367 = sphi 0, %s353
    %s373 = sphi 0, %s375
    %s376 = sphi 0, %s373
    %s377 = sphi 0, %s376
    %s393 = sphi 0, %s377
  $region4: #{sar_module_forward.1} parent=0 // loop_header_branch
    %25 = sbr.rel (%p23) target = $region8
  $region5: #{sar_module_forward.1} parent=0 // loop_body
    %s27 = ssub.s32 %s22, 1
    %s28 = ssub.s32 %s22, 2
    %s29 = sadd.s32 %s22, 1
    %s30 = ssub.s32 %s22, %s29
    %p31 = scmp.eq.s32.totalorder %s30, 0
    %s33 = sadd.s32 %s32, 1
    %s34 = scalar_select %p31, %s32, %s33
    %p37 = pneg %p31
    %p38 = scmp.eq.s32.totalorder %s22, 1
    %p39 = por %p37, %p38
    %p40 = scmp.ne.s32.totalorder %s32, %s35
    %p41 = scmp.eq.s32.totalorder %s22, 0
    %p42 = por %p40, %p41
    %p43 = scmp.ne.s32.totalorder %s32, %s35
    %p44 = scmp.eq.s32.totalorder %s27, 1
    %p45 = por %p43, %p44
    %p46 = scmp.ne.s32.totalorder %s35, %s36
    %p47 = scmp.eq.s32.totalorder %s27, 0
    %p48 = por %p46, %p47
    %p49 = scmp.ne.s32.totalorder %s35, %s36
    %p50 = scmp.eq.s32.totalorder %s28, 1
    %p51 = por %p49, %p50
    %p53 = scmp.ne.s32.totalorder %s36, %s52
    %p54 = scmp.eq.s32.totalorder %s28, 0
    %p55 = por %p53, %p54
    %s57 = sadd.s32 %s56, 1
    %p60 = scmp.eq.s32.totalorder %s22, 1
    %p61 = scmp.ne.s32.totalorder %s56, %s58
    %p62 = scmp.eq.s32.totalorder %s22, 0
    %p63 = por %p61, %p62
    %p64 = scmp.ne.s32.totalorder %s56, %s58
    %p65 = scmp.eq.s32.totalorder %s27, 1
    %p66 = por %p64, %p65
    %p67 = scmp.ne.s32.totalorder %s58, %s59
    %p68 = scmp.eq.s32.totalorder %s27, 0
    %p69 = por %p67, %p68
    %p70 = scmp.ne.s32.totalorder %s58, %s59
    %p71 = scmp.eq.s32.totalorder %s28, 1
    %p72 = por %p70, %p71
    %p74 = scmp.ne.s32.totalorder %s59, %s73
    %p75 = scmp.eq.s32.totalorder %s28, 0
    %p76 = por %p74, %p75
    %s78 = sadd.s32 %s77, 1
    %p81 = scmp.eq.s32.totalorder %s22, 1
    %p82 = scmp.ne.s32.totalorder %s77, %s79
    %p83 = scmp.eq.s32.totalorder %s22, 0
    %p84 = por %p82, %p83
    %p85 = scmp.ne.s32.totalorder %s77, %s79
    %p86 = scmp.eq.s32.totalorder %s27, 1
    %p87 = por %p85, %p86
    %p88 = scmp.ne.s32.totalorder %s79, %s80
    %p89 = scmp.eq.s32.totalorder %s27, 0
    %p90 = por %p88, %p89
    %p91 = scmp.ne.s32.totalorder %s79, %s80
    %p92 = scmp.eq.s32.totalorder %s28, 1
    %p93 = por %p91, %p92
    %p95 = scmp.ne.s32.totalorder %s80, %s94
    %p96 = scmp.eq.s32.totalorder %s28, 0
    %p97 = por %p95, %p96
    %s99 = sadd.s32 %s98, 1
    %p102 = scmp.eq.s32.totalorder %s22, 1
    %p103 = scmp.ne.s32.totalorder %s98, %s100
    %p104 = scmp.eq.s32.totalorder %s22, 0
    %p105 = por %p103, %p104
    %p106 = scmp.ne.s32.totalorder %s98, %s100
    %p107 = scmp.eq.s32.totalorder %s27, 1
    %p108 = por %p106, %p107
    %p109 = scmp.ne.s32.totalorder %s100, %s101
    %p110 = scmp.eq.s32.totalorder %s27, 0
    %p111 = por %p109, %p110
    %p112 = scmp.ne.s32.totalorder %s100, %s101
    %p113 = scmp.eq.s32.totalorder %s28, 1
    %p114 = por %p112, %p113
    %p116 = scmp.ne.s32.totalorder %s101, %s115
    %p117 = scmp.eq.s32.totalorder %s28, 0
    %p118 = por %p116, %p117
    %s120 = sadd.s32 %s119, 1
    %p123 = scmp.eq.s32.totalorder %s22, 1
    %p124 = scmp.ne.s32.totalorder %s119, %s121
    %p125 = scmp.eq.s32.totalorder %s22, 0
    %p126 = por %p124, %p125
    %p127 = scmp.ne.s32.totalorder %s119, %s121
    %p128 = scmp.eq.s32.totalorder %s27, 1
    %p129 = por %p127, %p128
    %p130 = scmp.ne.s32.totalorder %s121, %s122
    %p131 = scmp.eq.s32.totalorder %s27, 0
    %p132 = por %p130, %p131
    %p133 = scmp.ne.s32.totalorder %s121, %s122
    %p134 = scmp.eq.s32.totalorder %s28, 1
    %p135 = por %p133, %p134
    %p137 = scmp.ne.s32.totalorder %s122, %s136
    %p138 = scmp.eq.s32.totalorder %s28, 0
    %p139 = por %p137, %p138
    %s141 = sadd.s32 %s140, 1
    %p144 = scmp.eq.s32.totalorder %s22, 1
    %p145 = scmp.ne.s32.totalorder %s140, %s142
    %p146 = scmp.eq.s32.totalorder %s22, 0
    %p147 = por %p145, %p146
    %p148 = scmp.ne.s32.totalorder %s140, %s142
    %p149 = scmp.eq.s32.totalorder %s27, 1
    %p150 = por %p148, %p149
    %p151 = scmp.ne.s32.totalorder %s142, %s143
    %p152 = scmp.eq.s32.totalorder %s27, 0
    %p153 = por %p151, %p152
    %p154 = scmp.ne.s32.totalorder %s142, %s143
    %p155 = scmp.eq.s32.totalorder %s28, 1
    %p156 = por %p154, %p155
    %p158 = scmp.ne.s32.totalorder %s143, %s157
    %p159 = scmp.eq.s32.totalorder %s28, 0
    %p160 = por %p158, %p159
    %s162 = sadd.s32 %s161, 1
    %p165 = scmp.eq.s32.totalorder %s22, 1
    %p166 = scmp.ne.s32.totalorder %s161, %s163
    %p167 = scmp.eq.s32.totalorder %s22, 0
    %p168 = por %p166, %p167
    %p169 = scmp.ne.s32.totalorder %s161, %s163
    %p170 = scmp.eq.s32.totalorder %s27, 1
    %p171 = por %p169, %p170
    %p172 = scmp.ne.s32.totalorder %s163, %s164
    %p173 = scmp.eq.s32.totalorder %s27, 0
    %p174 = por %p172, %p173
    %p175 = scmp.ne.s32.totalorder %s163, %s164
    %p176 = scmp.eq.s32.totalorder %s28, 1
    %p177 = por %p175, %p176
    %p179 = scmp.ne.s32.totalorder %s164, %s178
    %p180 = scmp.eq.s32.totalorder %s28, 0
    %p181 = por %p179, %p180
    %s183 = sadd.s32 %s182, 1
    %p186 = scmp.eq.s32.totalorder %s22, 1
    %p187 = scmp.ne.s32.totalorder %s182, %s184
    %p188 = scmp.eq.s32.totalorder %s22, 0
    %p189 = por %p187, %p188
    %p190 = scmp.ne.s32.totalorder %s182, %s184
    %p191 = scmp.eq.s32.totalorder %s27, 1
    %p192 = por %p190, %p191
    %p193 = scmp.ne.s32.totalorder %s184, %s185
    %p194 = scmp.eq.s32.totalorder %s27, 0
    %p195 = por %p193, %p194
    %p196 = scmp.ne.s32.totalorder %s184, %s185
    %p197 = scmp.eq.s32.totalorder %s28, 1
    %p198 = por %p196, %p197
    %p200 = scmp.ne.s32.totalorder %s185, %s199
    %p201 = scmp.eq.s32.totalorder %s28, 0
    %p202 = por %p200, %p201
    %s204 = sadd.s32 %s203, 1
    %p207 = scmp.eq.s32.totalorder %s22, 1
    %p208 = scmp.ne.s32.totalorder %s203, %s205
    %p209 = scmp.eq.s32.totalorder %s22, 0
    %p210 = por %p208, %p209
    %p211 = scmp.ne.s32.totalorder %s203, %s205
    %p212 = scmp.eq.s32.totalorder %s27, 1
    %p213 = por %p211, %p212
    %p214 = scmp.ne.s32.totalorder %s205, %s206
    %p215 = scmp.eq.s32.totalorder %s27, 0
    %p216 = por %p214, %p215
    %p217 = scmp.ne.s32.totalorder %s205, %s206
    %p218 = scmp.eq.s32.totalorder %s28, 1
    %p219 = por %p217, %p218
    %p221 = scmp.ne.s32.totalorder %s206, %s220
    %p222 = scmp.eq.s32.totalorder %s28, 0
    %p223 = por %p221, %p222
    %s225 = sadd.s32 %s224, 1
    %p228 = scmp.eq.s32.totalorder %s22, 1
    %p229 = scmp.ne.s32.totalorder %s224, %s226
    %p230 = scmp.eq.s32.totalorder %s22, 0
    %p231 = por %p229, %p230
    %p232 = scmp.ne.s32.totalorder %s224, %s226
    %p233 = scmp.eq.s32.totalorder %s27, 1
    %p234 = por %p232, %p233
    %p235 = scmp.ne.s32.totalorder %s226, %s227
    %p236 = scmp.eq.s32.totalorder %s27, 0
    %p237 = por %p235, %p236
    %p238 = scmp.ne.s32.totalorder %s226, %s227
    %p239 = scmp.eq.s32.totalorder %s28, 1
    %p240 = por %p238, %p239
    %p242 = scmp.ne.s32.totalorder %s227, %s241
    %p243 = scmp.eq.s32.totalorder %s28, 0
    %p244 = por %p242, %p243
    %s246 = sadd.s32 %s245, 1
    %p249 = scmp.eq.s32.totalorder %s22, 1
    %p250 = scmp.ne.s32.totalorder %s245, %s247
    %p251 = scmp.eq.s32.totalorder %s22, 0
    %p252 = por %p250, %p251
    %p253 = scmp.ne.s32.totalorder %s245, %s247
    %p254 = scmp.eq.s32.totalorder %s27, 1
    %p255 = por %p253, %p254
    %p256 = scmp.ne.s32.totalorder %s247, %s248
    %p257 = scmp.eq.s32.totalorder %s27, 0
    %p258 = por %p256, %p257
    %p259 = scmp.ne.s32.totalorder %s247, %s248
    %p260 = scmp.eq.s32.totalorder %s28, 1
    %p261 = por %p259, %p260
    %p263 = scmp.ne.s32.totalorder %s248, %s262
    %p264 = scmp.eq.s32.totalorder %s28, 0
    %p265 = por %p263, %p264
    %s267 = sadd.s32 %s266, 1
    %p270 = scmp.eq.s32.totalorder %s22, 1
    %p271 = scmp.ne.s32.totalorder %s266, %s268
    %p272 = scmp.eq.s32.totalorder %s22, 0
    %p273 = por %p271, %p272
    %p274 = scmp.ne.s32.totalorder %s266, %s268
    %p275 = scmp.eq.s32.totalorder %s27, 1
    %p276 = por %p274, %p275
    %p277 = scmp.ne.s32.totalorder %s268, %s269
    %p278 = scmp.eq.s32.totalorder %s27, 0
    %p279 = por %p277, %p278
    %p280 = scmp.ne.s32.totalorder %s268, %s269
    %p281 = scmp.eq.s32.totalorder %s28, 1
    %p282 = por %p280, %p281
    %p284 = scmp.ne.s32.totalorder %s269, %s283
    %p285 = scmp.eq.s32.totalorder %s28, 0
    %p286 = por %p284, %p285
    %s288 = sadd.s32 %s287, 1
    %p291 = scmp.eq.s32.totalorder %s22, 1
    %p292 = scmp.ne.s32.totalorder %s287, %s289
    %p293 = scmp.eq.s32.totalorder %s22, 0
    %p294 = por %p292, %p293
    %p295 = scmp.ne.s32.totalorder %s287, %s289
    %p296 = scmp.eq.s32.totalorder %s27, 1
    %p297 = por %p295, %p296
    %p298 = scmp.ne.s32.totalorder %s289, %s290
    %p299 = scmp.eq.s32.totalorder %s27, 0
    %p300 = por %p298, %p299
    %p301 = scmp.ne.s32.totalorder %s289, %s290
    %p302 = scmp.eq.s32.totalorder %s28, 1
    %p303 = por %p301, %p302
    %p305 = scmp.ne.s32.totalorder %s290, %s304
    %p306 = scmp.eq.s32.totalorder %s28, 0
    %p307 = por %p305, %p306
    %s309 = sadd.s32 %s308, 1
    %p312 = scmp.eq.s32.totalorder %s22, 1
    %p313 = scmp.ne.s32.totalorder %s308, %s310
    %p314 = scmp.eq.s32.totalorder %s22, 0
    %p315 = por %p313, %p314
    %p316 = scmp.ne.s32.totalorder %s308, %s310
    %p317 = scmp.eq.s32.totalorder %s27, 1
    %p318 = por %p316, %p317
    %p319 = scmp.ne.s32.totalorder %s310, %s311
    %p320 = scmp.eq.s32.totalorder %s27, 0
    %p321 = por %p319, %p320
    %p322 = scmp.ne.s32.totalorder %s310, %s311
    %p323 = scmp.eq.s32.totalorder %s28, 1
    %p324 = por %p322, %p323
    %p326 = scmp.ne.s32.totalorder %s311, %s325
    %p327 = scmp.eq.s32.totalorder %s28, 0
    %p328 = por %p326, %p327
    %s330 = sadd.s32 %s329, 1
    %p333 = scmp.eq.s32.totalorder %s22, 1
    %p334 = scmp.ne.s32.totalorder %s329, %s331
    %p335 = scmp.eq.s32.totalorder %s22, 0
    %p336 = por %p334, %p335
    %p337 = scmp.ne.s32.totalorder %s329, %s331
    %p338 = scmp.eq.s32.totalorder %s27, 1
    %p339 = por %p337, %p338
    %p340 = scmp.ne.s32.totalorder %s331, %s332
    %p341 = scmp.eq.s32.totalorder %s27, 0
    %p342 = por %p340, %p341
    %p343 = scmp.ne.s32.totalorder %s331, %s332
    %p344 = scmp.eq.s32.totalorder %s28, 1
    %p345 = por %p343, %p344
    %p347 = scmp.ne.s32.totalorder %s332, %s346
    %p348 = scmp.eq.s32.totalorder %s28, 0
    %p349 = por %p347, %p348
    %s351 = sadd.s32 %s350, 1
    %p354 = scmp.eq.s32.totalorder %s22, 1
    %p355 = scmp.ne.s32.totalorder %s350, %s352
    %p356 = scmp.eq.s32.totalorder %s22, 0
    %p357 = por %p355, %p356
    %p358 = scmp.ne.s32.totalorder %s350, %s352
    %p359 = scmp.eq.s32.totalorder %s27, 1
    %p360 = por %p358, %p359
    %p361 = scmp.ne.s32.totalorder %s352, %s353
    %p362 = scmp.eq.s32.totalorder %s27, 0
    %p363 = por %p361, %p362
    %p364 = scmp.ne.s32.totalorder %s352, %s353
    %p365 = scmp.eq.s32.totalorder %s28, 1
    %p366 = por %p364, %p365
    %p368 = scmp.ne.s32.totalorder %s353, %s367
    %p369 = scmp.eq.s32.totalorder %s28, 0
    %p370 = por %p368, %p369
    %s371 = ssub.s32 %s22, %s29
    %p372 = scmp.eq.s32.totalorder %s371, 0
    %s374 = sadd.s32 %s373, 1
    %s375 = scalar_select %p372, %s373, %s374
    %p378 = pneg %p372
    %p379 = scmp.eq.s32.totalorder %s22, 1
    %p380 = por %p378, %p379
    %p381 = scmp.ne.s32.totalorder %s373, %s376
    %p382 = scmp.eq.s32.totalorder %s22, 0
    %p383 = por %p381, %p382
    %p384 = scmp.ne.s32.totalorder %s373, %s376
    %p385 = scmp.eq.s32.totalorder %s27, 1
    %p386 = por %p384, %p385
    %p387 = scmp.ne.s32.totalorder %s376, %s377
    %p388 = scmp.eq.s32.totalorder %s27, 0
    %p389 = por %p387, %p388
    %p390 = scmp.ne.s32.totalorder %s376, %s377
    %p391 = scmp.eq.s32.totalorder %s28, 1
    %p392 = por %p390, %p391
    %p394 = scmp.ne.s32.totalorder %s377, %s393
    %p395 = scmp.eq.s32.totalorder %s28, 0
    %p396 = por %p394, %p395
    %p397 = scmp.le.s32.totalorder 1, %s22
    %p398 = scmp.lt.s32.totalorder %s22, 3
    %p399 = pnand %p397, %p398
    %p400 = pneg %p399
    // Predicated region
    $region9: #{sar_module_forward.1} parent=5 // pred_check
      _
    $region10: #{sar_module_forward.1} parent=5 // pred_check_branch
      %402 = sbr.rel (%p399) target = $region12
    $region11: #{sar_module_forward.1} parent=5 // pred_region
      %s403 = ssub.s32 %s22, 1
      // Predicated region
      $region13: #{sar_module_forward.1} parent=11 // pred_check
        %p404 = pneg %p69
      $region14: #{sar_module_forward.1} parent=11 // pred_check_branch
        %406 = sbr.rel (%p404) target = $region16
      $region15: #{sar_module_forward.1} parent=11 // pred_region
        _
      $region16: #{sar_module_forward.1} parent=11 // pred_fallthru
        _
      // Predicated region
      $region17: #{sar_module_forward.1} parent=11 // pred_check
        %p407 = pneg %p90
      $region18: #{sar_module_forward.1} parent=11 // pred_check_branch
        %409 = sbr.rel (%p407) target = $region20
      $region19: #{sar_module_forward.1} parent=11 // pred_region
        _
      $region20: #{sar_module_forward.1} parent=11 // pred_fallthru
        _
      // Predicated region
      $region21: #{sar_module_forward.1} parent=11 // pred_check
        %p410 = pneg %p111
      $region22: #{sar_module_forward.1} parent=11 // pred_check_branch
        %412 = sbr.rel (%p410) target = $region24
      $region23: #{sar_module_forward.1} parent=11 // pred_region
        _
      $region24: #{sar_module_forward.1} parent=11 // pred_fallthru
        _
      // Predicated region
      $region25: #{sar_module_forward.1} parent=11 // pred_check
        %p413 = pneg %p132
      $region26: #{sar_module_forward.1} parent=11 // pred_check_branch
        %415 = sbr.rel (%p413) target = $region28
      $region27: #{sar_module_forward.1} parent=11 // pred_region
        _
      $region28: #{sar_module_forward.1} parent=11 // pred_fallthru
        _
      // Predicated region
      $region29: #{sar_module_forward.1} parent=11 // pred_check
        %p416 = pneg %p153
      $region30: #{sar_module_forward.1} parent=11 // pred_check_branch
        %418 = sbr.rel (%p416) target = $region32
      $region31: #{sar_module_forward.1} parent=11 // pred_region
        _
      $region32: #{sar_module_forward.1} parent=11 // pred_fallthru
        _
      // Predicated region
      $region33: #{sar_module_forward.1} parent=11 // pred_check
        %p419 = pneg %p174
      $region34: #{sar_module_forward.1} parent=11 // pred_check_branch
        %421 = sbr.rel (%p419) target = $region36
      $region35: #{sar_module_forward.1} parent=11 // pred_region
        _
      $region36: #{sar_module_forward.1} parent=11 // pred_fallthru
        _
      // Predicated region
      $region37: #{sar_module_forward.1} parent=11 // pred_check
        %p422 = pneg %p195
      $region38: #{sar_module_forward.1} parent=11 // pred_check_branch
        %424 = sbr.rel (%p422) target = $region40
      $region39: #{sar_module_forward.1} parent=11 // pred_region
        _
      $region40: #{sar_module_forward.1} parent=11 // pred_fallthru
        _
      // Predicated region
      $region41: #{sar_module_forward.1} parent=11 // pred_check
        %p425 = pneg %p216
      $region42: #{sar_module_forward.1} parent=11 // pred_check_branch
        %427 = sbr.rel (%p425) target = $region44
      $region43: #{sar_module_forward.1} parent=11 // pred_region
        _
      $region44: #{sar_module_forward.1} parent=11 // pred_fallthru
        _
      // Predicated region
      $region45: #{sar_module_forward.1} parent=11 // pred_check
        %p428 = pneg %p237
      $region46: #{sar_module_forward.1} parent=11 // pred_check_branch
        %430 = sbr.rel (%p428) target = $region48
      $region47: #{sar_module_forward.1} parent=11 // pred_region
        _
      $region48: #{sar_module_forward.1} parent=11 // pred_fallthru
        _
      // Predicated region
      $region49: #{sar_module_forward.1} parent=11 // pred_check
        %p431 = pneg %p258
      $region50: #{sar_module_forward.1} parent=11 // pred_check_branch
        %433 = sbr.rel (%p431) target = $region52
      $region51: #{sar_module_forward.1} parent=11 // pred_region
        _
      $region52: #{sar_module_forward.1} parent=11 // pred_fallthru
        _
      // Predicated region
      $region53: #{sar_module_forward.1} parent=11 // pred_check
        %p434 = pneg %p279
      $region54: #{sar_module_forward.1} parent=11 // pred_check_branch
        %436 = sbr.rel (%p434) target = $region56
      $region55: #{sar_module_forward.1} parent=11 // pred_region
        _
      $region56: #{sar_module_forward.1} parent=11 // pred_fallthru
        _
      // Predicated region
      $region57: #{sar_module_forward.1} parent=11 // pred_check
        %p437 = pneg %p300
      $region58: #{sar_module_forward.1} parent=11 // pred_check_branch
        %439 = sbr.rel (%p437) target = $region60
      $region59: #{sar_module_forward.1} parent=11 // pred_region
        _
      $region60: #{sar_module_forward.1} parent=11 // pred_fallthru
        _
      // Predicated region
      $region61: #{sar_module_forward.1} parent=11 // pred_check
        %p440 = pneg %p321
      $region62: #{sar_module_forward.1} parent=11 // pred_check_branch
        %442 = sbr.rel (%p440) target = $region64
      $region63: #{sar_module_forward.1} parent=11 // pred_region
        _
      $region64: #{sar_module_forward.1} parent=11 // pred_fallthru
        _
      // Predicated region
      $region65: #{sar_module_forward.1} parent=11 // pred_check
        %p443 = pneg %p342
      $region66: #{sar_module_forward.1} parent=11 // pred_check_branch
        %445 = sbr.rel (%p443) target = $region68
      $region67: #{sar_module_forward.1} parent=11 // pred_region
        _
      $region68: #{sar_module_forward.1} parent=11 // pred_fallthru
        _
      // Predicated region
      $region69: #{sar_module_forward.1} parent=11 // pred_check
        %p446 = pneg %p363
      $region70: #{sar_module_forward.1} parent=11 // pred_check_branch
        %448 = sbr.rel (%p446) target = $region72
      $region71: #{sar_module_forward.1} parent=11 // pred_region
        _
      $region72: #{sar_module_forward.1} parent=11 // pred_fallthru
        _
    $region12: #{sar_module_forward.1} parent=5 // pred_fallthru
      _
    %p449 = scmp.lt.s32.totalorder %s22, 2
    // Predicated region
    $region73: #{sar_module_forward.1} parent=5 // pred_check
      %p450 = pneg %p449
    $region74: #{sar_module_forward.1} parent=5 // pred_check_branch
      %452 = sbr.rel (%p450) target = $region76
    $region75: #{sar_module_forward.1} parent=5 // pred_region
      // Predicated region
      $region77: #{sar_module_forward.1} parent=75 // pred_check
        %p453 = pneg %p42
      $region78: #{sar_module_forward.1} parent=75 // pred_check_branch
        %455 = sbr.rel (%p453) target = $region80
      $region79: #{sar_module_forward.1} parent=75 // pred_region
        %s456 = smul.u32 2, %s22
        %p457 = scmp.lt.s32.totalorder %s456, 3
        %s458 = scalar_select %p457, %s456, 3
        %s459 = smul.addr %s458, 2
        %s460 = smul.addr %s459, 8
        %s461 = scalar_lea.vmem %s0, %s460
        %s462 = smul.u32 2, %s22
      $region80: #{sar_module_forward.1} parent=75 // pred_fallthru
        _
    $region76: #{sar_module_forward.1} parent=5 // pred_fallthru
      _
    %p463 = scmp.le.s32.totalorder 1, %s22
    %p464 = scmp.lt.s32.totalorder %s22, 3
    %p465 = pnand %p463, %p464
    %p466 = pneg %p465
    // Predicated region
    $region81: #{sar_module_forward.1} parent=5 // pred_check
      _
    $region82: #{sar_module_forward.1} parent=5 // pred_check_branch
      %468 = sbr.rel (%p465) target = $region84
    $region83: #{sar_module_forward.1} parent=5 // pred_region
      %s469 = ssub.s32 %s22, 1
      %s470 = smul.u32 2, %s27
      %p471 = scmp.lt.s32.totalorder %s470, 3
      %s472 = scalar_select %p471, %s470, 3
      %s473 = smul.addr %s472, 2
      %s474 = smul.addr %s473, 8
      %s475 = scalar_lea.vmem %s0, %s474
      %p476 = pneg %p48
      %p477 = pneg %p45
      %p478 = pneg %p69
      %p479 = pneg %p66
      %p480 = pneg %p90
      %p481 = pneg %p87
      %p482 = pneg %p111
      %p483 = pneg %p108
      %p484 = pneg %p132
      %p485 = pneg %p129
      %p486 = pneg %p153
      %p487 = pneg %p150
      %p488 = pneg %p174
      %p489 = pneg %p171
      %p490 = pneg %p195
      %p491 = pneg %p192
      %p492 = pneg %p216
      %p493 = pneg %p213
      %p494 = pneg %p237
      %p495 = pneg %p234
      %p496 = pneg %p258
      %p497 = pneg %p255
      %p498 = pneg %p279
      %p499 = pneg %p276
      %p500 = pneg %p300
      %p501 = pneg %p297
      %p502 = pneg %p321
      %p503 = pneg %p318
      %p504 = pneg %p342
      %p505 = pneg %p339
      %p506 = pneg %p363
      %p507 = pneg %p360
      %p508 = pneg %p389
      %p509 = pneg %p386
      %s510 = smul.u32 2, %s27
      %p511 = scmp.lt.s32.totalorder %s510, 3
      %s512 = scalar_select %p511, %s510, 3
      %s513 = smul.addr %s512, 2
      %s514 = smul.addr %s513, 8
      %s515 = scalar_lea.vmem %s16, %s514
      %s516 = smul.u32 2, %s27
      %p517 = scmp.lt.s32.totalorder %s516, 3
      %s518 = scalar_select %p517, %s516, 3
      %s519 = smul.addr %s518, 2
      %s520 = smul.addr %s519, 8
      %s521 = scalar_lea.vmem %s0, %s520
      %s522 = smul.u32 2, %s27
      %s523 = smul.u32 2, %s27
      %p524 = scmp.lt.s32.totalorder %s523, 3
      %s525 = scalar_select %p524, %s523, 3
      %s526 = smul.addr %s525, 2
      %s527 = smul.addr %s526, 8
      %s528 = scalar_lea.vmem %s16, %s527
      %s529 = smul.u32 2, %s27
      %v531 = vld [vmem:[%s521] sm:$0xff]
      %v532 = vld [vmem:[%s521 + $0x8] sm:$0xff]
      %v533 = vld [vmem:[%s521 + $0x10] sm:$0xff]
      %v534 = vld [vmem:[%s521 + $0x18] sm:$0xff]
      %v535 = vld [vmem:[%s1] sm:$0xff]
      %v536 = vld [vmem:[%s1 + $0x8] sm:$0xff]
      %v537 = vld [vmem:[%s1 + $0x10] sm:$0x1]
      %v538 = vld [vmem:[%s1 + $0x18] sm:$0x1]
      %v539 = vld [vmem:[%s2] sm:$0xff]
      %v540 = vld [vmem:[%s2 + $0x8] sm:$0x1]
      %v541 = vld [vmem:[%s5] sm:$0x3]
      %542 = vrot.lane.b32.xlu0 %v531, 17
      %v543 = vpop.permute.xlu0 %542
      %544 = vrot.lane.b32.xlu0 %v533, 17
      %v545 = vpop.permute.xlu0 %544
      %546 = vrot.lane.b32.xlu0 %v532, 17
      %v547 = vpop.permute.xlu0 %546
      %548 = vrot.lane.b32.xlu0 %v534, 17
      %v549 = vpop.permute.xlu0 %548
      %v550 = vlaneseq
      %v551 = vand.u32 %v550, 127
      %vm552 = vcmp.lt.s32.totalorder %v551, 17
      %v553 = vsel %vm552, %v543, %v547
      %v554 = vsel %vm552, %v545, %v549
      %v555 = vsel %vm552, %v547, %v543
      %v556 = vsel %vm552, %v549, %v545
      %v557 = vlaneseq
      %v558 = vshrl.u32 %v557, 7
      %v559 = vsub.s32 0, %v558
      %v560 = vrot.slane %v535, %v559
      %v561 = vlaneseq
      %v562 = vshrl.u32 %v561, 7
      %v563 = vsub.s32 0, %v562
      %v564 = vrot.slane %v536, %v563
      %v565 = vmul.f32 %v555, %v560
      %v566 = vmul.f32 %v553, %v564
      %v567 = vmul.f32 %v556, %v560
      %v568 = vmul.f32 %v554, %v564
      %v569 = vpack.c.bf16 %v567, %v565
      %v570 = vpack.c.bf16 %v568, %v566
      %571 = vrot.lane.b32.xlu0 %v531, 16
      %v572 = vpop.permute.xlu0 %571
      %573 = vrot.lane.b32.xlu0 %v533, 16
      %v574 = vpop.permute.xlu0 %573
      %575 = vrot.lane.b32.xlu0 %v532, 16
      %v576 = vpop.permute.xlu0 %575
      %577 = vrot.lane.b32.xlu0 %v534, 16
      %v578 = vpop.permute.xlu0 %577
      %vm579 = vcmp.lt.s32.totalorder %v551, 16
      %v580 = vsel %vm579, %v572, %v576
      %v581 = vsel %vm579, %v574, %v578
      %v582 = vsel %vm579, %v576, %v572
      %v583 = vsel %vm579, %v578, %v574
      %v584 = vlaneseq
      %v585 = vshrl.u32 %v584, 7
      %v586 = vsub.s32 1, %v585
      %v587 = vrot.slane %v535, %v586
      %v588 = vlaneseq
      %v589 = vshrl.u32 %v588, 7
      %v590 = vsub.s32 1, %v589
      %v591 = vrot.slane %v536, %v590
      %v592 = vmul.f32 %v582, %v587
      %v593 = vmul.f32 %v580, %v591
      %v594 = vmul.f32 %v583, %v587
      %v595 = vmul.f32 %v581, %v591
      %v596 = vpack.c.bf16 %v594, %v592
      %v597 = vpack.c.bf16 %v595, %v593
      %598 = vrot.lane.b32.xlu0 %v531, 15
      %v599 = vpop.permute.xlu0 %598
      %600 = vrot.lane.b32.xlu0 %v533, 15
      %v601 = vpop.permute.xlu0 %600
      %602 = vrot.lane.b32.xlu0 %v532, 15
      %v603 = vpop.permute.xlu0 %602
      %604 = vrot.lane.b32.xlu0 %v534, 15
      %v605 = vpop.permute.xlu0 %604
      %vm606 = vcmp.lt.s32.totalorder %v551, 15
      %v607 = vsel %vm606, %v599, %v603
      %v608 = vsel %vm606, %v601, %v605
      %v609 = vsel %vm606, %v603, %v599
      %v610 = vsel %vm606, %v605, %v601
      %v611 = vlaneseq
      %v612 = vshrl.u32 %v611, 7
      %v613 = vsub.s32 2, %v612
      %v614 = vrot.slane %v535, %v613
      %v615 = vlaneseq
      %v616 = vshrl.u32 %v615, 7
      %v617 = vsub.s32 2, %v616
      %v618 = vrot.slane %v536, %v617
      %v619 = vmul.f32 %v609, %v614
      %v620 = vmul.f32 %v607, %v618
      %v621 = vmul.f32 %v610, %v614
      %v622 = vmul.f32 %v608, %v618
      %v623 = vpack.c.bf16 %v621, %v619
      %v624 = vpack.c.bf16 %v622, %v620
      %625 = vrot.lane.b32.xlu0 %v531, 1
      %v626 = vpop.permute.xlu0 %625
      %627 = vrot.lane.b32.xlu0 %v533, 1
      %v628 = vpop.permute.xlu0 %627
      %629 = vrot.lane.b32.xlu0 %v532, 1
      %v630 = vpop.permute.xlu0 %629
      %631 = vrot.lane.b32.xlu0 %v534, 1
      %v632 = vpop.permute.xlu0 %631
      %vm633 = vcmp.lt.s32.totalorder %v551, 1
      %v634 = vsel %vm633, %v626, %v630
      %v635 = vsel %vm633, %v628, %v632
      %v636 = vsel %vm633, %v630, %v626
      %v637 = vsel %vm633, %v632, %v628
      %v638 = vlaneseq
      %v639 = vshrl.u32 %v638, 7
      %v640 = vsub.s32 3, %v639
      %v641 = vrot.slane %v535, %v640
      %v642 = vlaneseq
      %v643 = vshrl.u32 %v642, 7
      %v644 = vsub.s32 3, %v643
      %v645 = vrot.slane %v536, %v644
      %v646 = vmul.f32 %v636, %v641
      %v647 = vmul.f32 %v634, %v645
      %v648 = vmul.f32 %v637, %v641
      %v649 = vmul.f32 %v635, %v645
      %v650 = vpack.c.bf16 %v648, %v646
      %v651 = vpack.c.bf16 %v649, %v647
      %v652 = vpack.c.bf16 %v533, %v531
      %v653 = vpack.c.bf16 %v534, %v532
      %654 = vrot.lane.b32.xlu0 %v531, 127
      %v655 = vpop.permute.xlu0 %654
      %656 = vrot.lane.b32.xlu0 %v533, 127
      %v657 = vpop.permute.xlu0 %656
      %658 = vrot.lane.b32.xlu0 %v532, 127
      %v659 = vpop.permute.xlu0 %658
      %660 = vrot.lane.b32.xlu0 %v534, 127
      %v661 = vpop.permute.xlu0 %660
      %vm662 = vcmp.lt.s32.totalorder %v551, 127
      %v663 = vsel %vm662, %v655, %v659
      %v664 = vsel %vm662, %v657, %v661
      %v665 = vsel %vm662, %v659, %v655
      %v666 = vsel %vm662, %v661, %v657
      %v667 = vlaneseq
      %v668 = vshrl.u32 %v667, 7
      %v669 = vsub.s32 5, %v668
      %v670 = vrot.slane %v535, %v669
      %v671 = vlaneseq
      %v672 = vshrl.u32 %v671, 7
      %v673 = vsub.s32 5, %v672
      %v674 = vrot.slane %v536, %v673
      %v675 = vmul.f32 %v663, %v670
      %v676 = vmul.f32 %v665, %v674
      %v677 = vmul.f32 %v664, %v670
      %v678 = vmul.f32 %v666, %v674
      %v679 = vpack.c.bf16 %v677, %v675
      %v680 = vpack.c.bf16 %v678, %v676
      %681 = vrot.lane.b32.xlu0 %v531, 113
      %v682 = vpop.permute.xlu0 %681
      %683 = vrot.lane.b32.xlu0 %v533, 113
      %v684 = vpop.permute.xlu0 %683
      %685 = vrot.lane.b32.xlu0 %v532, 113
      %v686 = vpop.permute.xlu0 %685
      %687 = vrot.lane.b32.xlu0 %v534, 113
      %v688 = vpop.permute.xlu0 %687
      %vm689 = vcmp.lt.s32.totalorder %v551, 113
      %v690 = vsel %vm689, %v682, %v686
      %v691 = vsel %vm689, %v684, %v688
      %v692 = vsel %vm689, %v686, %v682
      %v693 = vsel %vm689, %v688, %v684
      %v694 = vlaneseq
      %v695 = vshrl.u32 %v694, 7
      %v696 = vsub.s32 6, %v695
      %v697 = vrot.slane %v535, %v696
      %v698 = vlaneseq
      %v699 = vshrl.u32 %v698, 7
      %v700 = vsub.s32 6, %v699
      %v701 = vrot.slane %v536, %v700
      %v702 = vmul.f32 %v690, %v697
      %v703 = vmul.f32 %v692, %v701
      %v704 = vmul.f32 %v691, %v697
      %v705 = vmul.f32 %v693, %v701
      %v706 = vpack.c.bf16 %v704, %v702
      %v707 = vpack.c.bf16 %v705, %v703
      %708 = vrot.lane.b32.xlu0 %v531, 112
      %v709 = vpop.permute.xlu0 %708
      %710 = vrot.lane.b32.xlu0 %v533, 112
      %v711 = vpop.permute.xlu0 %710
      %712 = vrot.lane.b32.xlu0 %v532, 112
      %v713 = vpop.permute.xlu0 %712
      %714 = vrot.lane.b32.xlu0 %v534, 112
      %v715 = vpop.permute.xlu0 %714
      %vm716 = vcmp.lt.s32.totalorder %v551, 112
      %v717 = vsel %vm716, %v709, %v713
      %v718 = vsel %vm716, %v711, %v715
      %v719 = vsel %vm716, %v713, %v709
      %v720 = vsel %vm716, %v715, %v711
      %v721 = vlaneseq
      %v722 = vshrl.u32 %v721, 7
      %v723 = vsub.s32 7, %v722
      %v724 = vrot.slane %v535, %v723
      %v725 = vlaneseq
      %v726 = vshrl.u32 %v725, 7
      %v727 = vsub.s32 7, %v726
      %v728 = vrot.slane %v536, %v727
      %v729 = vmul.f32 %v717, %v724
      %v730 = vmul.f32 %v719, %v728
      %v731 = vmul.f32 %v718, %v724
      %v732 = vmul.f32 %v720, %v728
      %v733 = vpack.c.bf16 %v731, %v729
      %v734 = vpack.c.bf16 %v732, %v730
      %735 = vrot.lane.b32.xlu0 %v531, 111
      %v736 = vpop.permute.xlu0 %735
      %737 = vrot.lane.b32.xlu0 %v533, 111
      %v738 = vpop.permute.xlu0 %737
      %739 = vrot.lane.b32.xlu0 %v532, 111
      %v740 = vpop.permute.xlu0 %739
      %741 = vrot.lane.b32.xlu0 %v534, 111
      %v742 = vpop.permute.xlu0 %741
      %vm743 = vcmp.lt.s32.totalorder %v551, 111
      %v744 = vsel %vm743, %v736, %v740
      %v745 = vsel %vm743, %v738, %v742
      %v746 = vsel %vm743, %v740, %v736
      %v747 = vsel %vm743, %v742, %v738
      %v748 = vlaneseq
      %v749 = vshrl.u32 %v748, 7
      %v750 = vsub.s32 0, %v749
      %v751 = vrot.slane %v537, %v750
      %v752 = vlaneseq
      %v753 = vshrl.u32 %v752, 7
      %v754 = vsub.s32 0, %v753
      %v755 = vrot.slane %v538, %v754
      %v756 = vmul.f32 %v744, %v751
      %v757 = vmul.f32 %v746, %v755
      %v758 = vmul.f32 %v745, %v751
      %v759 = vmul.f32 %v747, %v755
      %v760 = vpack.c.bf16 %v758, %v756
      %v761 = vpack.c.bf16 %v759, %v757
      %v762 = vld [vmem:[%s6] sm:$0xff]
      %v763 = vld [vmem:[%s6 + $0x8] sm:$0xff]
      %v764 = vld [vmem:[%s6 + $0x10] sm:$0xff]
      %v765 = vld [vmem:[%s6 + $0x18] sm:$0xff]
      %v766 = vld [vmem:[%s6 + $0x20] sm:$0xff]
      %v767 = vld [vmem:[%s6 + $0x28] sm:$0xff]
      %v768 = vld [vmem:[%s7] sm:$0xff]
      %v769 = vld [vmem:[%s7 + $0x8] sm:$0xff]
      %v770 = vld [vmem:[%s7 + $0x10] sm:$0xff]
      %v771 = vld [vmem:[%s7 + $0x18] sm:$0xff]
      %v772 = vld [vmem:[%s7 + $0x20] sm:$0xff]
      %v773 = vld [vmem:[%s7 + $0x28] sm:$0xff]
      %775 = vset.pattern.permute.xlu0 0
      %776 = vperm.xlu0 %775, %v768
      %v777 = vpop.permute.xlu0 %776
      %780 = vset.pattern.permute.xlu0 0
      %781 = vperm.xlu0 %780, %v769
      %v782 = vpop.permute.xlu0 %781
      %785 = vset.pattern.permute.xlu0 0
      %786 = vperm.xlu0 %785, %v770
      %v787 = vpop.permute.xlu0 %786
      %790 = vset.pattern.permute.xlu0 0
      %791 = vperm.xlu0 %790, %v771
      %v792 = vpop.permute.xlu0 %791
      %795 = vset.pattern.permute.xlu0 0
      %796 = vperm.xlu0 %795, %v772
      %v797 = vpop.permute.xlu0 %796
      %800 = vset.pattern.permute.xlu0 0
      %801 = vperm.xlu0 %800, %v773
      %v802 = vpop.permute.xlu0 %801
      %v810 = vunpack.c.l.b16 %v762
      %v811 = vunpack.c.h.b16 %v762
      %v812 = vunpack.c.l.b16 %v763
      %v813 = vunpack.c.h.b16 %v763
      %v814 = vunpack.c.l.b16 %v764
      %v815 = vunpack.c.h.b16 %v764
      %v816 = vunpack.c.l.b16 %v765
      %v817 = vunpack.c.h.b16 %v765
      %v818 = vunpack.c.l.b16 %v766
      %v819 = vunpack.c.h.b16 %v766
      %v820 = vunpack.c.l.b16 %v767
      %v821 = vunpack.c.h.b16 %v767
      %v822 = vpack.c.b16 %v812, %v810
      %v823 = vpack.c.b16 %v813, %v811
      %v824 = vpack.c.b16 %v816, %v814
      %v825 = vpack.c.b16 %v817, %v815
      %v826 = vpack.c.b16 %v820, %v818
      %v827 = vpack.c.b16 %v821, %v819
      %vm831 = vcmask 130048
      %v833 = vsel %vm831, %v823, 0
      %v836 = vsel %vm831, %v825, 0
      %v839 = vsel %vm831, %v827, 0
      %841 = vmatprep.subr.bf16.mxu0 %v570
      %842 = vmatpush1.bf16.msra.mxu0 %v569
      %843 = vmatprep.subr.bf16.mxu0 %v597
      %844 = vmatpush1.bf16.msra.mxu0 %v596
      %845 = vmatprep.subr.bf16.mxu0 %v624
      %846 = vmatpush1.bf16.msra.mxu0 %v623
      %847 = vmatprep.subr.bf16.mxu0 %v651
      %848 = vmatpush1.bf16.msra.mxu0 %v650
      %849 = vmatprep.subr.bf16.mxu0 %v653
      %850 = vmatpush1.bf16.msra.mxu0 %v652
      %851 = vmatprep.subr.bf16.mxu0 %v680
      %852 = vmatpush1.bf16.msra.mxu0 %v679
      %853 = vmatprep.subr.bf16.mxu0 %v707
      %854 = vmatpush1.bf16.msra.mxu0 %v706
      %855 = vmatprep.subr.bf16.mxu0 %v734
      %856 = vmatpush1.bf16.msra.mxu0 %v733
      %857 = vmatprep.subr.bf16.mxu0 %v761
      %858 = vmatpush1.bf16.msra.mxu0 %v760
      %859 = vmatprep.subr.bf16.mxu0 0
      %860 = vmatpush1.bf16.msra.mxu0 0
      %861 = vmatprep.subr.bf16.mxu0 0
      %862 = vmatpush1.bf16.msra.mxu0 0
      %863 = vmatprep.subr.bf16.mxu0 0
      %864 = vmatpush1.bf16.msra.mxu0 0
      %865 = vmatprep.subr.bf16.mxu0 0
      %866 = vmatpush1.bf16.msra.mxu0 0
      %867 = vmatprep.subr.bf16.mxu0 0
      %868 = vmatpush1.bf16.msra.mxu0 0
      %869 = vmatprep.subr.bf16.mxu0 0
      %870 = vmatpush1.bf16.msra.mxu0 0
      %871 = vmatprep.subr.bf16.mxu0 0
      %872 = vmatpush1.bf16.msra.mxu0 0
      %873 = vmatprep.mubr.bf16.mxu0 %v833
      %874 = vmatmul.mubr.bf16.gmra.mrb[0].mxu0 %v822
      %v875 = vpop.f32.mrb[0].mxu0
      %v876 = vadd.f32 %v777, %v875
      %v877 = vpop.f32.mrb[0].mxu0
      %v878 = vadd.f32 %v777, %v877
      %v879 = vpop.f32.mrb[0].mxu0
      %v880 = vadd.f32 %v782, %v879
      %v881 = vpop.f32.mrb[0].mxu0
      %v882 = vadd.f32 %v782, %v881
      %883 = vmatprep.mubr.bf16.mxu0 %v836
      %884 = vmatmul.mubr.bf16.gmra.mrb[0].mxu0 %v824
      %v885 = vpop.f32.mrb[0].mxu0
      %v886 = vadd.f32 %v787, %v885
      %v887 = vpop.f32.mrb[0].mxu0
      %v888 = vadd.f32 %v787, %v887
      %v889 = vpop.f32.mrb[0].mxu0
      %v890 = vadd.f32 %v792, %v889
      %v891 = vpop.f32.mrb[0].mxu0
      %v892 = vadd.f32 %v792, %v891
      %893 = vmatprep.mubr.bf16.mxu0 %v839
      %894 = vmatmul.mubr.bf16.gmra.mrb[0].mxu0 %v826
      %v895 = vpop.f32.mrb[0].mxu0
      %v896 = vadd.f32 %v797, %v895
      %v897 = vpop.f32.mrb[0].mxu0
      %v898 = vadd.f32 %v797, %v897
      %v899 = vpop.f32.mrb[0].mxu0
      %v900 = vadd.f32 %v802, %v899
      %v901 = vpop.f32.mrb[0].mxu0
      %v902 = vadd.f32 %v802, %v901
      %903 = vdwg.mxu0
      %v904 = vmax.f32 %v896, 0.0
      %v905 = vmax.f32 %v898, 0.0
      %v906 = vmax.f32 %v900, 0.0
      %v907 = vmax.f32 %v902, 0.0
      %v908 = vpack.c.bf16 %v880, %v876
      %v909 = vpack.c.bf16 %v882, %v878
      %v910 = vpack.c.bf16 %v890, %v886
      %v911 = vpack.c.bf16 %v892, %v888
      %v912 = vld [vmem:[%s3] sm:$0xf]
      %v913 = vld [vmem:[%s3 + $0x4] sm:$0xf]
      %v914 = vld [vmem:[%s3 + $0x8] sm:$0xf]
      %v915 = vld [vmem:[%s3 + $0xc] sm:$0xf]
      %v916 = vld [vmem:[%s3 + $0x10] sm:$0xf]
      %v917 = vld [vmem:[%s3 + $0x14] sm:$0xf]
      %v918 = vld [vmem:[%s3 + $0x18] sm:$0xf]
      %v919 = vld [vmem:[%s3 + $0x1c] sm:$0xf]
      %v920 = vld [vmem:[%s3 + $0x20] sm:$0xf]
      %v921 = vld [vmem:[%s3 + $0x24] sm:$0xf]
      %v922 = vld [vmem:[%s3 + $0x28] sm:$0xf]
      %v923 = vld [vmem:[%s3 + $0x2c] sm:$0xf]
      %v924 = vld [vmem:[%s3 + $0x30] sm:$0xf]
      %v925 = vld [vmem:[%s3 + $0x34] sm:$0xf]
      %v926 = vld [vmem:[%s3 + $0x38] sm:$0xf]
      %v927 = vld [vmem:[%s3 + $0x3c] sm:$0xf]
      %v928 = vld [vmem:[%s3 + $0x40] sm:$0xf]
      %v929 = vld [vmem:[%s3 + $0x44] sm:$0xf]
      %v930 = vld [vmem:[%s3 + $0x48] sm:$0xf]
      %v931 = vld [vmem:[%s3 + $0x4c] sm:$0xf]
      %v932 = vld [vmem:[%s3 + $0x50] sm:$0xf]
      %v933 = vld [vmem:[%s3 + $0x54] sm:$0xf]
      %v934 = vld [vmem:[%s3 + $0x58] sm:$0xf]
      %v935 = vld [vmem:[%s3 + $0x5c] sm:$0xf]
      %v936 = vld [vmem:[%s3 + $0x60] sm:$0xf]
      %v937 = vld [vmem:[%s3 + $0x64] sm:$0xf]
      %v938 = vld [vmem:[%s3 + $0x68] sm:$0xf]
      %v939 = vld [vmem:[%s3 + $0x6c] sm:$0xf]
      %v940 = vld [vmem:[%s3 + $0x70] sm:$0xf]
      %v941 = vld [vmem:[%s3 + $0x74] sm:$0xf]
      %v942 = vld [vmem:[%s3 + $0x78] sm:$0xf]
      %v943 = vld [vmem:[%s3 + $0x7c] sm:$0xf]
      %v976 = vunpack.c.l.b16 %v912
      %v977 = vunpack.c.l.b16 %v913
      %v978 = vunpack.c.l.b16 %v914
      %v979 = vunpack.c.l.b16 %v915
      %v980 = vunpack.c.l.b16 %v916
      %v981 = vunpack.c.l.b16 %v917
      %v982 = vunpack.c.l.b16 %v918
      %v983 = vunpack.c.l.b16 %v919
      %v984 = vunpack.c.l.b16 %v920
      %v985 = vunpack.c.l.b16 %v921
      %v986 = vunpack.c.l.b16 %v922
      %v987 = vunpack.c.l.b16 %v923
      %v988 = vunpack.c.l.b16 %v924
      %v989 = vunpack.c.l.b16 %v925
      %v990 = vunpack.c.l.b16 %v926
      %v991 = vunpack.c.l.b16 %v927
      %v992 = vunpack.c.l.b16 %v928
      %v993 = vunpack.c.l.b16 %v929
      %v994 = vunpack.c.l.b16 %v930
      %v995 = vunpack.c.l.b16 %v931
      %v996 = vunpack.c.l.b16 %v932
      %v997 = vunpack.c.l.b16 %v933
      %v998 = vunpack.c.l.b16 %v934
      %v999 = vunpack.c.l.b16 %v935
      %v1000 = vunpack.c.l.b16 %v936
      %v1001 = vunpack.c.l.b16 %v937
      %v1002 = vunpack.c.l.b16 %v938
      %v1003 = vunpack.c.l.b16 %v939
      %v1004 = vunpack.c.l.b16 %v940
      %v1005 = vunpack.c.l.b16 %v941
      %v1006 = vunpack.c.l.b16 %v942
      %v1007 = vunpack.c.l.b16 %v943
      %v1008 = vpack.c.b16 %v977, %v976
      %v1009 = vpack.c.b16 %v979, %v978
      %v1010 = vpack.c.b16 %v981, %v980
      %v1011 = vpack.c.b16 %v983, %v982
      %v1012 = vpack.c.b16 %v985, %v984
      %v1013 = vpack.c.b16 %v987, %v986
      %v1014 = vpack.c.b16 %v989, %v988
      %v1015 = vpack.c.b16 %v991, %v990
      %v1016 = vpack.c.b16 %v993, %v992
      %v1017 = vpack.c.b16 %v995, %v994
      %v1018 = vpack.c.b16 %v997, %v996
      %v1019 = vpack.c.b16 %v999, %v998
      %v1020 = vpack.c.b16 %v1001, %v1000
      %v1021 = vpack.c.b16 %v1003, %v1002
      %v1022 = vpack.c.b16 %v1005, %v1004
      %v1023 = vpack.c.b16 %v1007, %v1006
      %1040 = vmatprep.subr.bf16.mxu0 0
      %1041 = vmatpush1.bf16.msra.mxu0 %v1008
      %1042 = vmatprep.subr.bf16.mxu0 0
      %1043 = vmatpush1.bf16.msra.mxu0 %v1009
      %1044 = vmatprep.subr.bf16.mxu0 0
      %1045 = vmatpush1.bf16.msra.mxu0 %v1010
      %1046 = vmatprep.subr.bf16.mxu0 0
      %1047 = vmatpush1.bf16.msra.mxu0 %v1011
      %1048 = vmatprep.subr.bf16.mxu0 0
      %1049 = vmatpush1.bf16.msra.mxu0 %v1012
      %1050 = vmatprep.subr.bf16.mxu0 0
      %1051 = vmatpush1.bf16.msra.mxu0 %v1013
      %1052 = vmatprep.subr.bf16.mxu0 0
      %1053 = vmatpush1.bf16.msra.mxu0 %v1014
      %1054 = vmatprep.subr.bf16.mxu0 0
      %1055 = vmatpush1.bf16.msra.mxu0 %v1015
      %1056 = vmatprep.subr.bf16.mxu0 0
      %1057 = vmatpush1.bf16.msra.mxu0 %v1016
      %1058 = vmatprep.subr.bf16.mxu0 0
      %1059 = vmatpush1.bf16.msra.mxu0 %v1017
      %1060 = vmatprep.subr.bf16.mxu0 0
      %1061 = vmatpush1.bf16.msra.mxu0 %v1018
      %1062 = vmatprep.subr.bf16.mxu0 0
      %1063 = vmatpush1.bf16.msra.mxu0 %v1019
      %1064 = vmatprep.subr.bf16.mxu0 0
      %1065 = vmatpush1.bf16.msra.mxu0 %v1020
      %1066 = vmatprep.subr.bf16.mxu0 0
      %1067 = vmatpush1.bf16.msra.mxu0 %v1021
      %1068 = vmatprep.subr.bf16.mxu0 0
      %1069 = vmatpush1.bf16.msra.mxu0 %v1022
      %1070 = vmatprep.subr.bf16.mxu0 0
      %1071 = vmatpush1.bf16.msra.mxu0 %v1023
      %1072 = vmatprep.mubr.bf16.mxu0 %v909
      %1073 = vmatmul.mubr.bf16.gmra.mrb[0].mxu0 %v908
      %v1074 = vpop.f32.mrb[0].mxu0
      %v1075 = vadd.f32 0.0, %v1074
      %v1076 = vpop.f32.mrb[0].mxu0
      %v1077 = vpop.f32.mrb[0].mxu0
      %v1078 = vadd.f32 0.0, %v1077
      %v1079 = vpop.f32.mrb[0].mxu0
      %1080 = vmatprep.mubr.bf16.mxu0 %v911
      %1081 = vmatmul.mubr.bf16.gmra.mrb[0].mxu0 %v910
      %v1082 = vpop.f32.mrb[0].mxu0
      %v1083 = vadd.f32 0.0, %v1082
      %v1084 = vpop.f32.mrb[0].mxu0
      %v1085 = vpop.f32.mrb[0].mxu0
      %v1086 = vadd.f32 0.0, %v1085
      %v1087 = vpop.f32.mrb[0].mxu0
      %1088 = vdwg.mxu0
      %v1089 = vmax.f32 %v1075, 0.0
      %v1090 = vmax.f32 %v1078, 0.0
      %1093 = vrot.lane.b32.xlu0 %v1089, 73
      %v1094 = vpop.permute.xlu0 %1093
      %1095 = vrot.lane.b32.xlu0 %v1090, 73
      %v1096 = vpop.permute.xlu0 %1095
      %1099 = vrot.lane.b32.xlu0 %v1089, 9
      %v1100 = vpop.permute.xlu0 %1099
      %1101 = vrot.lane.b32.xlu0 %v1090, 9
      %v1102 = vpop.permute.xlu0 %1101
      %vm1105 = vcmask 72704
      %v1106 = vsel %vm1105, %v1094, %v1100
      %v1107 = vsel %vm1105, %v1096, %v1102
      %v1108 = vlaneseq
      %v1109 = vshrl.u32 %v1108, 7
      %v1110 = vsub.s32 0, %v1109
      %v1111 = vrot.slane %v539, %v1110
      %v1112 = vmul.f32 %v1106, %v1111
      %v1113 = vmul.f32 %v1107, %v1111
      %v1114 = vpack.c.bf16 %v1113, %v1112
      %1115 = vrot.lane.b32.xlu0 %v1089, 72
      %v1116 = vpop.permute.xlu0 %1115
      %1117 = vrot.lane.b32.xlu0 %v1090, 72
      %v1118 = vpop.permute.xlu0 %1117
      %1121 = vrot.lane.b32.xlu0 %v1089, 8
      %v1122 = vpop.permute.xlu0 %1121
      %1123 = vrot.lane.b32.xlu0 %v1090, 8
      %v1124 = vpop.permute.xlu0 %1123
      %vm1127 = vcmask 64512
      %v1128 = vsel %vm1127, %v1116, %v1122
      %v1129 = vsel %vm1127, %v1118, %v1124
      %v1130 = vlaneseq
      %v1131 = vshrl.u32 %v1130, 7
      %v1132 = vsub.s32 1, %v1131
      %v1133 = vrot.slane %v539, %v1132
      %v1134 = vmul.f32 %v1128, %v1133
      %v1135 = vmul.f32 %v1129, %v1133
      %v1136 = vpack.c.bf16 %v1135, %v1134
      %1137 = vrot.lane.b32.xlu0 %v1089, 71
      %v1138 = vpop.permute.xlu0 %1137
      %1139 = vrot.lane.b32.xlu0 %v1090, 71
      %v1140 = vpop.permute.xlu0 %1139
      %1143 = vrot.lane.b32.xlu0 %v1089, 7
      %v1144 = vpop.permute.xlu0 %1143
      %1145 = vrot.lane.b32.xlu0 %v1090, 7
      %v1146 = vpop.permute.xlu0 %1145
      %vm1149 = vcmask 56320
      %v1150 = vsel %vm1149, %v1138, %v1144
      %v1151 = vsel %vm1149, %v1140, %v1146
      %v1152 = vlaneseq
      %v1153 = vshrl.u32 %v1152, 7
      %v1154 = vsub.s32 2, %v1153
      %v1155 = vrot.slane %v539, %v1154
      %v1156 = vmul.f32 %v1150, %v1155
      %v1157 = vmul.f32 %v1151, %v1155
      %v1158 = vpack.c.bf16 %v1157, %v1156
      %1159 = vrot.lane.b32.xlu0 %v1089, 65
      %v1160 = vpop.permute.xlu0 %1159
      %1161 = vrot.lane.b32.xlu0 %v1090, 65
      %v1162 = vpop.permute.xlu0 %1161
      %1165 = vrot.lane.b32.xlu0 %v1089, 1
      %v1166 = vpop.permute.xlu0 %1165
      %1167 = vrot.lane.b32.xlu0 %v1090, 1
      %v1168 = vpop.permute.xlu0 %1167
      %vm1171 = vcmask 7168
      %v1172 = vsel %vm1171, %v1160, %v1166
      %v1173 = vsel %vm1171, %v1162, %v1168
      %v1174 = vlaneseq
      %v1175 = vshrl.u32 %v1174, 7
      %v1176 = vsub.s32 3, %v1175
      %v1177 = vrot.slane %v539, %v1176
      %v1178 = vmul.f32 %v1172, %v1177
      %v1179 = vmul.f32 %v1173, %v1177
      %v1180 = vpack.c.bf16 %v1179, %v1178
      %v1181 = vpack.c.bf16 %v1090, %v1089
      %1182 = vrot.lane.b32.xlu0 %v1089, 127
      %v1183 = vpop.permute.xlu0 %1182
      %1184 = vrot.lane.b32.xlu0 %v1090, 127
      %v1185 = vpop.permute.xlu0 %1184
      %1188 = vrot.lane.b32.xlu0 %v1089, 63
      %v1189 = vpop.permute.xlu0 %1188
      %1190 = vrot.lane.b32.xlu0 %v1090, 63
      %v1191 = vpop.permute.xlu0 %1190
      %vm1194 = vcmask 515072
      %v1195 = vsel %vm1194, %v1183, %v1189
      %v1196 = vsel %vm1194, %v1185, %v1191
      %v1197 = vlaneseq
      %v1198 = vshrl.u32 %v1197, 7
      %v1199 = vsub.s32 5, %v1198
      %v1200 = vrot.slane %v539, %v1199
      %v1201 = vmul.f32 %v1195, %v1200
      %v1202 = vmul.f32 %v1196, %v1200
      %v1203 = vpack.c.bf16 %v1202, %v1201
      %1204 = vrot.lane.b32.xlu0 %v1089, 121
      %v1205 = vpop.permute.xlu0 %1204
      %1206 = vrot.lane.b32.xlu0 %v1090, 121
      %v1207 = vpop.permute.xlu0 %1206
      %1210 = vrot.lane.b32.xlu0 %v1089, 57
      %v1211 = vpop.permute.xlu0 %1210
      %1212 = vrot.lane.b32.xlu0 %v1090, 57
      %v1213 = vpop.permute.xlu0 %1212
      %vm1216 = vcmask 465920
      %v1217 = vsel %vm1216, %v1205, %v1211
      %v1218 = vsel %vm1216, %v1207, %v1213
      %v1219 = vlaneseq
      %v1220 = vshrl.u32 %v1219, 7
      %v1221 = vsub.s32 6, %v1220
      %v1222 = vrot.slane %v539, %v1221
      %v1223 = vmul.f32 %v1217, %v1222
      %v1224 = vmul.f32 %v1218, %v1222
      %v1225 = vpack.c.bf16 %v1224, %v1223
      %1226 = vrot.lane.b32.xlu0 %v1089, 120
      %v1227 = vpop.permute.xlu0 %1226
      %1228 = vrot.lane.b32.xlu0 %v1090, 120
      %v1229 = vpop.permute.xlu0 %1228
      %1232 = vrot.lane.b32.xlu0 %v1089, 56
      %v1233 = vpop.permute.xlu0 %1232
      %1234 = vrot.lane.b32.xlu0 %v1090, 56
      %v1235 = vpop.permute.xlu0 %1234
      %vm1238 = vcmask 457728
      %v1239 = vsel %vm1238, %v1227, %v1233
      %v1240 = vsel %vm1238, %v1229, %v1235
      %v1241 = vlaneseq
      %v1242 = vshrl.u32 %v1241, 7
      %v1243 = vsub.s32 7, %v1242
      %v1244 = vrot.slane %v539, %v1243
      %v1245 = vmul.f32 %v1239, %v1244
      %v1246 = vmul.f32 %v1240, %v1244
      %v1247 = vpack.c.bf16 %v1246, %v1245
      %1248 = vrot.lane.b32.xlu0 %v1089, 119
      %v1249 = vpop.permute.xlu0 %1248
      %1250 = vrot.lane.b32.xlu0 %v1090, 119
      %v1251 = vpop.permute.xlu0 %1250
      %1254 = vrot.lane.b32.xlu0 %v1089, 55
      %v1255 = vpop.permute.xlu0 %1254
      %1256 = vrot.lane.b32.xlu0 %v1090, 55
      %v1257 = vpop.permute.xlu0 %1256
      %vm1260 = vcmask 449536
      %v1261 = vsel %vm1260, %v1249, %v1255
      %v1262 = vsel %vm1260, %v1251, %v1257
      %v1263 = vlaneseq
      %v1264 = vshrl.u32 %v1263, 7
      %v1265 = vsub.s32 0, %v1264
      %v1266 = vrot.slane %v540, %v1265
      %v1267 = vmul.f32 %v1261, %v1266
      %v1268 = vmul.f32 %v1262, %v1266
      %v1269 = vpack.c.bf16 %v1268, %v1267
      %v1270 = vld [vmem:[%s8] sm:$0xff]
      %v1271 = vld [vmem:[%s8 + $0x8] sm:$0xff]
      %v1272 = vld [vmem:[%s9] sm:$0xff]
      %v1273 = vld [vmem:[%s9 + $0x8] sm:$0xff]
      %1275 = vset.pattern.permute.xlu0 0
      %1276 = vperm.xlu0 %1275, %v1272
      %v1277 = vpop.permute.xlu0 %1276
      %1280 = vset.pattern.permute.xlu0 0
      %1281 = vperm.xlu0 %1280, %v1273
      %v1282 = vpop.permute.xlu0 %1281
      %v1286 = vunpack.c.l.b16 %v1270
      %v1287 = vunpack.c.h.b16 %v1270
      %v1288 = vunpack.c.l.b16 %v1271
      %v1289 = vunpack.c.h.b16 %v1271
      %v1290 = vpack.c.b16 %v1288, %v1286
      %v1291 = vpack.c.b16 %v1289, %v1287
      %v1294 = vsel %vm831, %v1291, 0
      %1296 = vmatprep.subr.bf16.mxu0 0
      %1297 = vmatpush1.bf16.msra.mxu0 %v1114
      %1298 = vmatprep.subr.bf16.mxu0 0
      %1299 = vmatpush1.bf16.msra.mxu0 %v1136
      %1300 = vmatprep.subr.bf16.mxu0 0
      %1301 = vmatpush1.bf16.msra.mxu0 %v1158
      %1302 = vmatprep.subr.bf16.mxu0 0
      %1303 = vmatpush1.bf16.msra.mxu0 %v1180
      %1304 = vmatprep.subr.bf16.mxu0 0
      %1305 = vmatpush1.bf16.msra.mxu0 %v1181
      %1306 = vmatprep.subr.bf16.mxu0 0
      %1307 = vmatpush1.bf16.msra.mxu0 %v1203
      %1308 = vmatprep.subr.bf16.mxu0 0
      %1309 = vmatpush1.bf16.msra.mxu0 %v1225
      %1310 = vmatprep.subr.bf16.mxu0 0
      %1311 = vmatpush1.bf16.msra.mxu0 %v1247
      %1312 = vmatprep.subr.bf16.mxu0 0
      %1313 = vmatpush1.bf16.msra.mxu0 %v1269
      %1314 = vmatprep.subr.bf16.mxu0 0
      %1315 = vmatpush1.bf16.msra.mxu0 0
      %1316 = vmatprep.subr.bf16.mxu0 0
      %1317 = vmatpush1.bf16.msra.mxu0 0
      %1318 = vmatprep.subr.bf16.mxu0 0
      %1319 = vmatpush1.bf16.msra.mxu0 0
      %1320 = vmatprep.subr.bf16.mxu0 0
      %1321 = vmatpush1.bf16.msra.mxu0 0
      %1322 = vmatprep.subr.bf16.mxu0 0
      %1323 = vmatpush1.bf16.msra.mxu0 0
      %1324 = vmatprep.subr.bf16.mxu0 0
      %1325 = vmatpush1.bf16.msra.mxu0 0
      %1326 = vmatprep.subr.bf16.mxu0 0
      %1327 = vmatpush1.bf16.msra.mxu0 0
      %1328 = vmatprep.mubr.bf16.mxu0 %v1294
      %1329 = vmatmul.mubr.bf16.gmra.mrb[0].mxu0 %v1290
      %v1330 = vpop.f32.mrb[0].mxu0
      %v1331 = vadd.f32 %v1277, %v1330
      %v1332 = vpop.f32.mrb[0].mxu0
      %v1333 = vpop.f32.mrb[0].mxu0
      %v1334 = vadd.f32 %v1282, %v1333
      %v1335 = vpop.f32.mrb[0].mxu0
      %1336 = vdwg.mxu0
      %v1337 = vadd.f32 %v1331, %v1083
      %v1338 = vadd.f32 %v1334, %v1086
      %v1339 = vmax.f32 %v1337, 0.0
      %v1340 = vmax.f32 %v1338, 0.0
      %1341 = vrot.lane.b32.xlu0 %v904, 17
      %v1342 = vpop.permute.xlu0 %1341
      %1343 = vrot.lane.b32.xlu0 %v906, 17
      %v1344 = vpop.permute.xlu0 %1343
      %1345 = vrot.lane.b32.xlu0 %v905, 17
      %v1346 = vpop.permute.xlu0 %1345
      %1347 = vrot.lane.b32.xlu0 %v907, 17
      %v1348 = vpop.permute.xlu0 %1347
      %v1349 = vsel %vm552, %v1342, %v1346
      %v1350 = vsel %vm552, %v1344, %v1348
      %v1351 = vsel %vm552, %v1346, %v1342
      %v1352 = vsel %vm552, %v1348, %v1344
      %v1353 = vmul.f32 %v1351, %v560
      %v1354 = vmul.f32 %v1349, %v564
      %v1355 = vmul.f32 %v1352, %v560
      %v1356 = vmul.f32 %v1350, %v564
      %v1357 = vpack.c.bf16 %v1355, %v1353
      %v1358 = vpack.c.bf16 %v1356, %v1354
      %1359 = vrot.lane.b32.xlu0 %v904, 16
      %v1360 = vpop.permute.xlu0 %1359
      %1361 = vrot.lane.b32.xlu0 %v906, 16
      %v1362 = vpop.permute.xlu0 %1361
      %1363 = vrot.lane.b32.xlu0 %v905, 16
      %v1364 = vpop.permute.xlu0 %1363
      %1365 = vrot.lane.b32.xlu0 %v907, 16
      %v1366 = vpop.permute.xlu0 %1365
      %v1367 = vsel %vm579, %v1360, %v1364
      %v1368 = vsel %vm579, %v1362, %v1366
      %v1369 = vsel %vm579, %v1364, %v1360
      %v1370 = vsel %vm579, %v1366, %v1362
      %v1371 = vmul.f32 %v1369, %v587
      %v1372 = vmul.f32 %v1367, %v591
      %v1373 = vmul.f32 %v1370, %v587
      %v1374 = vmul.f32 %v1368, %v591
      %v1375 = vpack.c.bf16 %v1373, %v1371
      %v1376 = vpack.c.bf16 %v1374, %v1372
      %1377 = vrot.lane.b32.xlu0 %v904, 15
      %v1378 = vpop.permute.xlu0 %1377
      %1379 = vrot.lane.b32.xlu0 %v906, 15
      %v1380 = vpop.permute.xlu0 %1379
      %1381 = vrot.lane.b32.xlu0 %v905, 15
      %v1382 = vpop.permute.xlu0 %1381
      %1383 = vrot.lane.b32.xlu0 %v907, 15
      %v1384 = vpop.permute.xlu0 %1383
      %v1385 = vsel %vm606, %v1378, %v1382
      %v1386 = vsel %vm606, %v1380, %v1384
      %v1387 = vsel %vm606, %v1382, %v1378
      %v1388 = vsel %vm606, %v1384, %v1380
      %v1389 = vmul.f32 %v1387, %v614
      %v1390 = vmul.f32 %v1385, %v618
      %v1391 = vmul.f32 %v1388, %v614
      %v1392 = vmul.f32 %v1386, %v618
      %v1393 = vpack.c.bf16 %v1391, %v1389
      %v1394 = vpack.c.bf16 %v1392, %v1390
      %1395 = vrot.lane.b32.xlu0 %v904, 1
      %v1396 = vpop.permute.xlu0 %1395
      %1397 = vrot.lane.b32.xlu0 %v906, 1
      %v1398 = vpop.permute.xlu0 %1397
      %1399 = vrot.lane.b32.xlu0 %v905, 1
      %v1400 = vpop.permute.xlu0 %1399
      %1401 = vrot.lane.b32.xlu0 %v907, 1
      %v1402 = vpop.permute.xlu0 %1401
      %v1403 = vsel %vm633, %v1396, %v1400
      %v1404 = vsel %vm633, %v1398, %v1402
      %v1405 = vsel %vm633, %v1400, %v1396
      %v1406 = vsel %vm633, %v1402, %v1398
      %v1407 = vmul.f32 %v1405, %v641
      %v1408 = vmul.f32 %v1403, %v645
      %v1409 = vmul.f32 %v1406, %v641
      %v1410 = vmul.f32 %v1404, %v645
      %v1411 = vpack.c.bf16 %v1409, %v1407
      %v1412 = vpack.c.bf16 %v1410, %v1408
      %v1413 = vpack.c.bf16 %v906, %v904
      %v1414 = vpack.c.bf16 %v907, %v905
      %1415 = vrot.lane.b32.xlu0 %v904, 127
      %v1416 = vpop.permute.xlu0 %1415
      %1417 = vrot.lane.b32.xlu0 %v906, 127
      %v1418 = vpop.permute.xlu0 %1417
      %1419 = vrot.lane.b32.xlu0 %v905, 127
      %v1420 = vpop.permute.xlu0 %1419
      %1421 = vrot.lane.b32.xlu0 %v907, 127
      %v1422 = vpop.permute.xlu0 %1421
      %v1423 = vsel %vm662, %v1416, %v1420
      %v1424 = vsel %vm662, %v1418, %v1422
      %v1425 = vsel %vm662, %v1420, %v1416
      %v1426 = vsel %vm662, %v1422, %v1418
      %v1427 = vmul.f32 %v1423, %v670
      %v1428 = vmul.f32 %v1425, %v674
      %v1429 = vmul.f32 %v1424, %v670
      %v1430 = vmul.f32 %v1426, %v674
      %v1431 = vpack.c.bf16 %v1429, %v1427
      %v1432 = vpack.c.bf16 %v1430, %v1428
      %1433 = vrot.lane.b32.xlu0 %v904, 113
      %v1434 = vpop.permute.xlu0 %1433
      %1435 = vrot.lane.b32.xlu0 %v906, 113
      %v1436 = vpop.permute.xlu0 %1435
      %1437 = vrot.lane.b32.xlu0 %v905, 113
      %v1438 = vpop.permute.xlu0 %1437
      %1439 = vrot.lane.b32.xlu0 %v907, 113
      %v1440 = vpop.permute.xlu0 %1439
      %v1441 = vsel %vm689, %v1434, %v1438
      %v1442 = vsel %vm689, %v1436, %v1440
      %v1443 = vsel %vm689, %v1438, %v1434
      %v1444 = vsel %vm689, %v1440, %v1436
      %v1445 = vmul.f32 %v1441, %v697
      %v1446 = vmul.f32 %v1443, %v701
      %v1447 = vmul.f32 %v1442, %v697
      %v1448 = vmul.f32 %v1444, %v701
      %v1449 = vpack.c.bf16 %v1447, %v1445
      %v1450 = vpack.c.bf16 %v1448, %v1446
      %1451 = vrot.lane.b32.xlu0 %v904, 112
      %v1452 = vpop.permute.xlu0 %1451
      %1453 = vrot.lane.b32.xlu0 %v906, 112
      %v1454 = vpop.permute.xlu0 %1453
      %1455 = vrot.lane.b32.xlu0 %v905, 112
      %v1456 = vpop.permute.xlu0 %1455
      %1457 = vrot.lane.b32.xlu0 %v907, 112
      %v1458 = vpop.permute.xlu0 %1457
      %v1459 = vsel %vm716, %v1452, %v1456
      %v1460 = vsel %vm716, %v1454, %v1458
      %v1461 = vsel %vm716, %v1456, %v1452
      %v1462 = vsel %vm716, %v1458, %v1454
      %v1463 = vmul.f32 %v1459, %v724
      %v1464 = vmul.f32 %v1461, %v728
      %v1465 = vmul.f32 %v1460, %v724
      %v1466 = vmul.f32 %v1462, %v728
      %v1467 = vpack.c.bf16 %v1465, %v1463
      %v1468 = vpack.c.bf16 %v1466, %v1464
      %1469 = vrot.lane.b32.xlu0 %v904, 111
      %v1470 = vpop.permute.xlu0 %1469
      %1471 = vrot.lane.b32.xlu0 %v906, 111
      %v1472 = vpop.permute.xlu0 %1471
      %1473 = vrot.lane.b32.xlu0 %v905, 111
      %v1474 = vpop.permute.xlu0 %1473
      %1475 = vrot.lane.b32.xlu0 %v907, 111
      %v1476 = vpop.permute.xlu0 %1475
      %v1477 = vsel %vm743, %v1470, %v1474
      %v1478 = vsel %vm743, %v1472, %v1476
      %v1479 = vsel %vm743, %v1474, %v1470
      %v1480 = vsel %vm743, %v1476, %v1472
      %v1481 = vmul.f32 %v1477, %v751
      %v1482 = vmul.f32 %v1479, %v755
      %v1483 = vmul.f32 %v1478, %v751
      %v1484 = vmul.f32 %v1480, %v755
      %v1485 = vpack.c.bf16 %v1483, %v1481
      %v1486 = vpack.c.bf16 %v1484, %v1482
      %v1487 = vld [vmem:[%s10] sm:$0xff]
      %v1488 = vld [vmem:[%s10 + $0x8] sm:$0xff]
      %v1489 = vld [vmem:[%s11] sm:$0xff]
      %v1490 = vld [vmem:[%s11 + $0x8] sm:$0xff]
      %1492 = vset.pattern.permute.xlu0 0
      %1493 = vperm.xlu0 %1492, %v1489
      %v1494 = vpop.permute.xlu0 %1493
      %1497 = vset.pattern.permute.xlu0 0
      %1498 = vperm.xlu0 %1497, %v1490
      %v1499 = vpop.permute.xlu0 %1498
      %v1503 = vunpack.c.l.b16 %v1487
      %v1504 = vunpack.c.h.b16 %v1487
      %v1505 = vunpack.c.l.b16 %v1488
      %v1506 = vunpack.c.h.b16 %v1488
      %v1507 = vpack.c.b16 %v1505, %v1503
      %v1508 = vpack.c.b16 %v1506, %v1504
      %v1511 = vsel %vm831, %v1508, 0
      %1513 = vmatprep.subr.bf16.mxu0 %v1358
      %1514 = vmatpush1.bf16.msra.mxu0 %v1357
      %1515 = vmatprep.subr.bf16.mxu0 %v1376
      %1516 = vmatpush1.bf16.msra.mxu0 %v1375
      %1517 = vmatprep.subr.bf16.mxu0 %v1394
      %1518 = vmatpush1.bf16.msra.mxu0 %v1393
      %1519 = vmatprep.subr.bf16.mxu0 %v1412
      %1520 = vmatpush1.bf16.msra.mxu0 %v1411
      %1521 = vmatprep.subr.bf16.mxu0 %v1414
      %1522 = vmatpush1.bf16.msra.mxu0 %v1413
      %1523 = vmatprep.subr.bf16.mxu0 %v1432
      %1524 = vmatpush1.bf16.msra.mxu0 %v1431
      %1525 = vmatprep.subr.bf16.mxu0 %v1450
      %1526 = vmatpush1.bf16.msra.mxu0 %v1449
      %1527 = vmatprep.subr.bf16.mxu0 %v1468
      %1528 = vmatpush1.bf16.msra.mxu0 %v1467
      %1529 = vmatprep.subr.bf16.mxu0 %v1486
      %1530 = vmatpush1.bf16.msra.mxu0 %v1485
      %1531 = vmatprep.subr.bf16.mxu0 0
      %1532 = vmatpush1.bf16.msra.mxu0 0
      %1533 = vmatprep.subr.bf16.mxu0 0
      %1534 = vmatpush1.bf16.msra.mxu0 0
      %1535 = vmatprep.subr.bf16.mxu0 0
      %1536 = vmatpush1.bf16.msra.mxu0 0
      %1537 = vmatprep.subr.bf16.mxu0 0
      %1538 = vmatpush1.bf16.msra.mxu0 0
      %1539 = vmatprep.subr.bf16.mxu0 0
      %1540 = vmatpush1.bf16.msra.mxu0 0
      %1541 = vmatprep.subr.bf16.mxu0 0
      %1542 = vmatpush1.bf16.msra.mxu0 0
      %1543 = vmatprep.subr.bf16.mxu0 0
      %1544 = vmatpush1.bf16.msra.mxu0 0
      %1545 = vmatprep.mubr.bf16.mxu0 %v1511
      %1546 = vmatmul.mubr.bf16.gmra.mrb[0].mxu0 %v1507
      %v1547 = vpop.f32.mrb[0].mxu0
      %v1548 = vadd.f32 %v1494, %v1547
      %v1549 = vpop.f32.mrb[0].mxu0
      %v1550 = vadd.f32 %v1494, %v1549
      %v1551 = vpop.f32.mrb[0].mxu0
      %v1552 = vadd.f32 %v1499, %v1551
      %v1553 = vpop.f32.mrb[0].mxu0
      %v1554 = vadd.f32 %v1499, %v1553
      %1555 = vdwg.mxu0
      %v1557 = vlaneseq
      %v1558 = vshrl.u32 %v1557, 7
      %v1559 = vsub.s32 0, %v1558
      %v1560 = vrot.slane %v541, %v1559
      %v1561 = vlaneseq
      %v1562 = vshrl.u32 %v1561, 7
      %v1563 = vsub.s32 1, %v1562
      %v1564 = vrot.slane %v541, %v1563
      %v1567 = vmul.f32 %v1548, %v1560
      %v1568 = vmul.f32 %v1550, %v1564
      %v1569 = vmul.f32 %v1552, %v1560
      %v1570 = vmul.f32 %v1554, %v1564
      %v1571 = vadd.f32 %v1567, %v531
      %v1572 = vadd.f32 %v1568, %v532
      %v1573 = vadd.f32 %v1569, %v533
      %v1574 = vadd.f32 %v1570, %v534
      %v1575 = vmax.f32 %v1571, 0.0
      %v1576 = vmax.f32 %v1572, 0.0
      %v1577 = vmax.f32 %v1573, 0.0
      %v1578 = vmax.f32 %v1574, 0.0
      %v1579 = vpack.c.bf16 %v1340, %v1339
      %v1580 = vld [vmem:[%s4] sm:$0xff]
      %v1581 = vld [vmem:[%s4 + $0x8] sm:$0xff]
      %v1582 = vld [vmem:[%s4 + $0x10] sm:$0xff]
      %v1583 = vld [vmem:[%s4 + $0x18] sm:$0xff]
      %v1584 = vld [vmem:[%s4 + $0x20] sm:$0xff]
      %v1585 = vld [vmem:[%s4 + $0x28] sm:$0xff]
      %v1586 = vld [vmem:[%s4 + $0x30] sm:$0xff]
      %v1587 = vld [vmem:[%s4 + $0x38] sm:$0xff]
      %v1596 = vunpack.c.l.b16 %v1580
      %v1597 = vunpack.c.h.b16 %v1580
      %v1598 = vunpack.c.l.b16 %v1581
      %v1599 = vunpack.c.h.b16 %v1581
      %v1600 = vunpack.c.l.b16 %v1582
      %v1601 = vunpack.c.h.b16 %v1582
      %v1602 = vunpack.c.l.b16 %v1583
      %v1603 = vunpack.c.h.b16 %v1583
      %v1604 = vunpack.c.l.b16 %v1584
      %v1605 = vunpack.c.h.b16 %v1584
      %v1606 = vunpack.c.l.b16 %v1585
      %v1607 = vunpack.c.h.b16 %v1585
      %v1608 = vunpack.c.l.b16 %v1586
      %v1609 = vunpack.c.h.b16 %v1586
      %v1610 = vunpack.c.l.b16 %v1587
      %v1611 = vunpack.c.h.b16 %v1587
      %v1612 = vpack.c.b16 %v1598, %v1596
      %v1613 = vpack.c.b16 %v1599, %v1597
      %v1614 = vpack.c.b16 %v1602, %v1600
      %v1615 = vpack.c.b16 %v1603, %v1601
      %v1616 = vpack.c.b16 %v1606, %v1604
      %v1617 = vpack.c.b16 %v1607, %v1605
      %v1618 = vpack.c.b16 %v1610, %v1608
      %v1619 = vpack.c.b16 %v1611, %v1609
      %vm1628 = vcmask 523264
      %v1630 = vsel %vm1628, %v1579, 0
      %1632 = vmatprep.subr.bf16.mxu0 %v1613
      %1633 = vmatpush1.bf16.msra.mxu0 %v1612
      %1634 = vmatprep.subr.bf16.mxu0 %v1615
      %1635 = vmatpush1.bf16.msra.mxu0 %v1614
      %1636 = vmatprep.subr.bf16.mxu0 %v1617
      %1637 = vmatpush1.bf16.msra.mxu0 %v1616
      %1638 = vmatprep.subr.bf16.mxu0 %v1619
      %1639 = vmatpush1.bf16.msra.mxu0 %v1618
      %1640 = vmatprep.subr.bf16.mxu0 0
      %1641 = vmatpush1.bf16.msra.mxu0 0
      %1642 = vmatprep.subr.bf16.mxu0 0
      %1643 = vmatpush1.bf16.msra.mxu0 0
      %1644 = vmatprep.subr.bf16.mxu0 0
      %1645 = vmatpush1.bf16.msra.mxu0 0
      %1646 = vmatprep.subr.bf16.mxu0 0
      %1647 = vmatpush1.bf16.msra.mxu0 0
      %1648 = vmatprep.subr.bf16.mxu0 0
      %1649 = vmatpush1.bf16.msra.mxu0 0
      %1650 = vmatprep.subr.bf16.mxu0 0
      %1651 = vmatpush1.bf16.msra.mxu0 0
      %1652 = vmatprep.subr.bf16.mxu0 0
      %1653 = vmatpush1.bf16.msra.mxu0 0
      %1654 = vmatprep.subr.bf16.mxu0 0
      %1655 = vmatpush1.bf16.msra.mxu0 0
      %1656 = vmatprep.subr.bf16.mxu0 0
      %1657 = vmatpush1.bf16.msra.mxu0 0
      %1658 = vmatprep.subr.bf16.mxu0 0
      %1659 = vmatpush1.bf16.msra.mxu0 0
      %1660 = vmatprep.subr.bf16.mxu0 0
      %1661 = vmatpush1.bf16.msra.mxu0 0
      %1662 = vmatprep.subr.bf16.mxu0 0
      %1663 = vmatpush1.bf16.msra.mxu0 0
      %1664 = vmatprep.mubr.bf16.mxu0 0
      %1665 = vmatmul.mubr.bf16.gmra.mrb[0].mxu0 %v1630
      %v1666 = vpop.f32.mrb[0].mxu0
      %v1667 = vadd.f32 %v1575, %v1666
      %v1668 = vpop.f32.mrb[0].mxu0
      %v1669 = vadd.f32 %v1576, %v1668
      %v1670 = vpop.f32.mrb[0].mxu0
      %v1671 = vadd.f32 %v1577, %v1670
      %v1672 = vpop.f32.mrb[0].mxu0
      %v1673 = vadd.f32 %v1578, %v1672
      %1674 = vdwg.mxu0
      %v1675 = vmax.f32 %v1667, 0.0
      %v1676 = vmax.f32 %v1669, 0.0
      %v1677 = vmax.f32 %v1671, 0.0
      %v1678 = vmax.f32 %v1673, 0.0
      %1679 = vrot.lane.b32.xlu0 %v1675, 17
      %v1680 = vpop.permute.xlu0 %1679
      %1681 = vrot.lane.b32.xlu0 %v1677, 17
      %v1682 = vpop.permute.xlu0 %1681
      %1683 = vrot.lane.b32.xlu0 %v1676, 17
      %v1684 = vpop.permute.xlu0 %1683
      %1685 = vrot.lane.b32.xlu0 %v1678, 17
      %v1686 = vpop.permute.xlu0 %1685
      %v1687 = vsel %vm552, %v1680, %v1684
      %v1688 = vsel %vm552, %v1682, %v1686
      %v1689 = vsel %vm552, %v1684, %v1680
      %v1690 = vsel %vm552, %v1686, %v1682
      %v1691 = vmul.f32 %v1689, %v560
      %v1692 = vmul.f32 %v1687, %v564
      %v1693 = vmul.f32 %v1690, %v560
      %v1694 = vmul.f32 %v1688, %v564
      %v1695 = vpack.c.bf16 %v1693, %v1691
      %v1696 = vpack.c.bf16 %v1694, %v1692
      %1697 = vrot.lane.b32.xlu0 %v1675, 16
      %v1698 = vpop.permute.xlu0 %1697
      %1699 = vrot.lane.b32.xlu0 %v1677, 16
      %v1700 = vpop.permute.xlu0 %1699
      %1701 = vrot.lane.b32.xlu0 %v1676, 16
      %v1702 = vpop.permute.xlu0 %1701
      %1703 = vrot.lane.b32.xlu0 %v1678, 16
      %v1704 = vpop.permute.xlu0 %1703
      %v1705 = vsel %vm579, %v1698, %v1702
      %v1706 = vsel %vm579, %v1700, %v1704
      %v1707 = vsel %vm579, %v1702, %v1698
      %v1708 = vsel %vm579, %v1704, %v1700
      %v1709 = vmul.f32 %v1707, %v587
      %v1710 = vmul.f32 %v1705, %v591
      %v1711 = vmul.f32 %v1708, %v587
      %v1712 = vmul.f32 %v1706, %v591
      %v1713 = vpack.c.bf16 %v1711, %v1709
      %v1714 = vpack.c.bf16 %v1712, %v1710
      %1715 = vrot.lane.b32.xlu0 %v1675, 15
      %v1716 = vpop.permute.xlu0 %1715
      %1717 = vrot.lane.b32.xlu0 %v1677, 15
      %v1718 = vpop.permute.xlu0 %1717
      %1719 = vrot.lane.b32.xlu0 %v1676, 15
      %v1720 = vpop.permute.xlu0 %1719
      %1721 = vrot.lane.b32.xlu0 %v1678, 15
      %v1722 = vpop.permute.xlu0 %1721
      %v1723 = vsel %vm606, %v1716, %v1720
      %v1724 = vsel %vm606, %v1718, %v1722
      %v1725 = vsel %vm606, %v1720, %v1716
      %v1726 = vsel %vm606, %v1722, %v1718
      %v1727 = vmul.f32 %v1725, %v614
      %v1728 = vmul.f32 %v1723, %v618
      %v1729 = vmul.f32 %v1726, %v614
      %v1730 = vmul.f32 %v1724, %v618
      %v1731 = vpack.c.bf16 %v1729, %v1727
      %v1732 = vpack.c.bf16 %v1730, %v1728
      %1733 = vrot.lane.b32.xlu0 %v1675, 1
      %v1734 = vpop.permute.xlu0 %1733
      %1735 = vrot.lane.b32.xlu0 %v1677, 1
      %v1736 = vpop.permute.xlu0 %1735
      %1737 = vrot.lane.b32.xlu0 %v1676, 1
      %v1738 = vpop.permute.xlu0 %1737
      %1739 = vrot.lane.b32.xlu0 %v1678, 1
      %v1740 = vpop.permute.xlu0 %1739
      %v1741 = vsel %vm633, %v1734, %v1738
      %v1742 = vsel %vm633, %v1736, %v1740
      %v1743 = vsel %vm633, %v1738, %v1734
      %v1744 = vsel %vm633, %v1740, %v1736
      %v1745 = vmul.f32 %v1743, %v641
      %v1746 = vmul.f32 %v1741, %v645
      %v1747 = vmul.f32 %v1744, %v641
      %v1748 = vmul.f32 %v1742, %v645
      %v1749 = vpack.c.bf16 %v1747, %v1745
      %v1750 = vpack.c.bf16 %v1748, %v1746
      %v1751 = vpack.c.bf16 %v1677, %v1675
      %v1752 = vpack.c.bf16 %v1678, %v1676
      %1753 = vrot.lane.b32.xlu0 %v1675, 127
      %v1754 = vpop.permute.xlu0 %1753
      %1755 = vrot.lane.b32.xlu0 %v1677, 127
      %v1756 = vpop.permute.xlu0 %1755
      %1757 = vrot.lane.b32.xlu0 %v1676, 127
      %v1758 = vpop.permute.xlu0 %1757
      %1759 = vrot.lane.b32.xlu0 %v1678, 127
      %v1760 = vpop.permute.xlu0 %1759
      %v1761 = vsel %vm662, %v1754, %v1758
      %v1762 = vsel %vm662, %v1756, %v1760
      %v1763 = vsel %vm662, %v1758, %v1754
      %v1764 = vsel %vm662, %v1760, %v1756
      %v1765 = vmul.f32 %v1761, %v670
      %v1766 = vmul.f32 %v1763, %v674
      %v1767 = vmul.f32 %v1762, %v670
      %v1768 = vmul.f32 %v1764, %v674
      %v1769 = vpack.c.bf16 %v1767, %v1765
      %v1770 = vpack.c.bf16 %v1768, %v1766
      %1771 = vrot.lane.b32.xlu0 %v1675, 113
      %v1772 = vpop.permute.xlu0 %1771
      %1773 = vrot.lane.b32.xlu0 %v1677, 113
      %v1774 = vpop.permute.xlu0 %1773
      %1775 = vrot.lane.b32.xlu0 %v1676, 113
      %v1776 = vpop.permute.xlu0 %1775
      %1777 = vrot.lane.b32.xlu0 %v1678, 113
      %v1778 = vpop.permute.xlu0 %1777
      %v1779 = vsel %vm689, %v1772, %v1776
      %v1780 = vsel %vm689, %v1774, %v1778
      %v1781 = vsel %vm689, %v1776, %v1772
      %v1782 = vsel %vm689, %v1778, %v1774
      %v1783 = vmul.f32 %v1779, %v697
      %v1784 = vmul.f32 %v1781, %v701
      %v1785 = vmul.f32 %v1780, %v697
      %v1786 = vmul.f32 %v1782, %v701
      %v1787 = vpack.c.bf16 %v1785, %v1783
      %v1788 = vpack.c.bf16 %v1786, %v1784
      %1789 = vrot.lane.b32.xlu0 %v1675, 112
      %v1790 = vpop.permute.xlu0 %1789
      %1791 = vrot.lane.b32.xlu0 %v1677, 112
      %v1792 = vpop.permute.xlu0 %1791
      %1793 = vrot.lane.b32.xlu0 %v1676, 112
      %v1794 = vpop.permute.xlu0 %1793
      %1795 = vrot.lane.b32.xlu0 %v1678, 112
      %v1796 = vpop.permute.xlu0 %1795
      %v1797 = vsel %vm716, %v1790, %v1794
      %v1798 = vsel %vm716, %v1792, %v1796
      %v1799 = vsel %vm716, %v1794, %v1790
      %v1800 = vsel %vm716, %v1796, %v1792
      %v1801 = vmul.f32 %v1797, %v724
      %v1802 = vmul.f32 %v1799, %v728
      %v1803 = vmul.f32 %v1798, %v724
      %v1804 = vmul.f32 %v1800, %v728
      %v1805 = vpack.c.bf16 %v1803, %v1801
      %v1806 = vpack.c.bf16 %v1804, %v1802
      %1807 = vrot.lane.b32.xlu0 %v1675, 111
      %v1808 = vpop.permute.xlu0 %1807
      %1809 = vrot.lane.b32.xlu0 %v1677, 111
      %v1810 = vpop.permute.xlu0 %1809
      %1811 = vrot.lane.b32.xlu0 %v1676, 111
      %v1812 = vpop.permute.xlu0 %1811
      %1813 = vrot.lane.b32.xlu0 %v1678, 111
      %v1814 = vpop.permute.xlu0 %1813
      %v1815 = vsel %vm743, %v1808, %v1812
      %v1816 = vsel %vm743, %v1810, %v1814
      %v1817 = vsel %vm743, %v1812, %v1808
      %v1818 = vsel %vm743, %v1814, %v1810
      %v1819 = vmul.f32 %v1815, %v751
      %v1820 = vmul.f32 %v1817, %v755
      %v1821 = vmul.f32 %v1816, %v751
      %v1822 = vmul.f32 %v1818, %v755
      %v1823 = vpack.c.bf16 %v1821, %v1819
      %v1824 = vpack.c.bf16 %v1822, %v1820
      %v1825 = vld [vmem:[%s12] sm:$0xff]
      %v1826 = vld [vmem:[%s12 + $0x8] sm:$0xff]
      %v1827 = vld [vmem:[%s13] sm:$0xff]
      %v1828 = vld [vmem:[%s13 + $0x8] sm:$0xff]
      %1830 = vset.pattern.permute.xlu0 0
      %1831 = vperm.xlu0 %1830, %v1827
      %v1832 = vpop.permute.xlu0 %1831
      %1835 = vset.pattern.permute.xlu0 0
      %1836 = vperm.xlu0 %1835, %v1828
      %v1837 = vpop.permute.xlu0 %1836
      %v1841 = vunpack.c.l.b16 %v1825
      %v1842 = vunpack.c.h.b16 %v1825
      %v1843 = vunpack.c.l.b16 %v1826
      %v1844 = vunpack.c.h.b16 %v1826
      %v1845 = vpack.c.b16 %v1843, %v1841
      %v1846 = vpack.c.b16 %v1844, %v1842
      %v1849 = vsel %vm831, %v1846, 0
      %1851 = vmatprep.subr.bf16.mxu0 %v1696
      %1852 = vmatpush1.bf16.msra.mxu0 %v1695
      %1853 = vmatprep.subr.bf16.mxu0 %v1714
      %1854 = vmatpush1.bf16.msra.mxu0 %v1713
      %1855 = vmatprep.subr.bf16.mxu0 %v1732
      %1856 = vmatpush1.bf16.msra.mxu0 %v1731
      %1857 = vmatprep.subr.bf16.mxu0 %v1750
      %1858 = vmatpush1.bf16.msra.mxu0 %v1749
      %1859 = vmatprep.subr.bf16.mxu0 %v1752
      %1860 = vmatpush1.bf16.msra.mxu0 %v1751
      %1861 = vmatprep.subr.bf16.mxu0 %v1770
      %1862 = vmatpush1.bf16.msra.mxu0 %v1769
      %1863 = vmatprep.subr.bf16.mxu0 %v1788
      %1864 = vmatpush1.bf16.msra.mxu0 %v1787
      %1865 = vmatprep.subr.bf16.mxu0 %v1806
      %1866 = vmatpush1.bf16.msra.mxu0 %v1805
      %1867 = vmatprep.subr.bf16.mxu0 %v1824
      %1868 = vmatpush1.bf16.msra.mxu0 %v1823
      %1869 = vmatprep.subr.bf16.mxu0 0
      %1870 = vmatpush1.bf16.msra.mxu0 0
      %1871 = vmatprep.subr.bf16.mxu0 0
      %1872 = vmatpush1.bf16.msra.mxu0 0
      %1873 = vmatprep.subr.bf16.mxu0 0
      %1874 = vmatpush1.bf16.msra.mxu0 0
      %1875 = vmatprep.subr.bf16.mxu0 0
      %1876 = vmatpush1.bf16.msra.mxu0 0
      %1877 = vmatprep.subr.bf16.mxu0 0
      %1878 = vmatpush1.bf16.msra.mxu0 0
      %1879 = vmatprep.subr.bf16.mxu0 0
      %1880 = vmatpush1.bf16.msra.mxu0 0
      %1881 = vmatprep.subr.bf16.mxu0 0
      %1882 = vmatpush1.bf16.msra.mxu0 0
      %1883 = vmatprep.mubr.bf16.mxu0 %v1849
      %1884 = vmatmul.mubr.bf16.gmra.mrb[0].mxu0 %v1845
      %v1885 = vpop.f32.mrb[0].mxu0
      %v1886 = vadd.f32 %v1832, %v1885
      %v1887 = vpop.f32.mrb[0].mxu0
      %v1888 = vadd.f32 %v1832, %v1887
      %v1889 = vpop.f32.mrb[0].mxu0
      %v1890 = vadd.f32 %v1837, %v1889
      %v1891 = vpop.f32.mrb[0].mxu0
      %v1892 = vadd.f32 %v1837, %v1891
      %1893 = vdwg.mxu0
      %v1894 = vmax.f32 %v1886, 0.0
      %v1895 = vmax.f32 %v1888, 0.0
      %v1896 = vmax.f32 %v1890, 0.0
      %v1897 = vmax.f32 %v1892, 0.0
      %1898 = vrot.lane.b32.xlu0 %v1894, 17
      %v1899 = vpop.permute.xlu0 %1898
      %1900 = vrot.lane.b32.xlu0 %v1896, 17
      %v1901 = vpop.permute.xlu0 %1900
      %1902 = vrot.lane.b32.xlu0 %v1895, 17
      %v1903 = vpop.permute.xlu0 %1902
      %1904 = vrot.lane.b32.xlu0 %v1897, 17
      %v1905 = vpop.permute.xlu0 %1904
      %v1906 = vsel %vm552, %v1899, %v1903
      %v1907 = vsel %vm552, %v1901, %v1905
      %v1908 = vsel %vm552, %v1903, %v1899
      %v1909 = vsel %vm552, %v1905, %v1901
      %v1910 = vmul.f32 %v1908, %v560
      %v1911 = vmul.f32 %v1906, %v564
      %v1912 = vmul.f32 %v1909, %v560
      %v1913 = vmul.f32 %v1907, %v564
      %v1914 = vpack.c.bf16 %v1912, %v1910
      %v1915 = vpack.c.bf16 %v1913, %v1911
      %1916 = vrot.lane.b32.xlu0 %v1894, 16
      %v1917 = vpop.permute.xlu0 %1916
      %1918 = vrot.lane.b32.xlu0 %v1896, 16
      %v1919 = vpop.permute.xlu0 %1918
      %1920 = vrot.lane.b32.xlu0 %v1895, 16
      %v1921 = vpop.permute.xlu0 %1920
      %1922 = vrot.lane.b32.xlu0 %v1897, 16
      %v1923 = vpop.permute.xlu0 %1922
      %v1924 = vsel %vm579, %v1917, %v1921
      %v1925 = vsel %vm579, %v1919, %v1923
      %v1926 = vsel %vm579, %v1921, %v1917
      %v1927 = vsel %vm579, %v1923, %v1919
      %v1928 = vmul.f32 %v1926, %v587
      %v1929 = vmul.f32 %v1924, %v591
      %v1930 = vmul.f32 %v1927, %v587
      %v1931 = vmul.f32 %v1925, %v591
      %v1932 = vpack.c.bf16 %v1930, %v1928
      %v1933 = vpack.c.bf16 %v1931, %v1929
      %1934 = vrot.lane.b32.xlu0 %v1894, 15
      %v1935 = vpop.permute.xlu0 %1934
      %1936 = vrot.lane.b32.xlu0 %v1896, 15
      %v1937 = vpop.permute.xlu0 %1936
      %1938 = vrot.lane.b32.xlu0 %v1895, 15
      %v1939 = vpop.permute.xlu0 %1938
      %1940 = vrot.lane.b32.xlu0 %v1897, 15
      %v1941 = vpop.permute.xlu0 %1940
      %v1942 = vsel %vm606, %v1935, %v1939
      %v1943 = vsel %vm606, %v1937, %v1941
      %v1944 = vsel %vm606, %v1939, %v1935
      %v1945 = vsel %vm606, %v1941, %v1937
      %v1946 = vmul.f32 %v1944, %v614
      %v1947 = vmul.f32 %v1942, %v618
      %v1948 = vmul.f32 %v1945, %v614
      %v1949 = vmul.f32 %v1943, %v618
      %v1950 = vpack.c.bf16 %v1948, %v1946
      %v1951 = vpack.c.bf16 %v1949, %v1947
      %1952 = vrot.lane.b32.xlu0 %v1894, 1
      %v1953 = vpop.permute.xlu0 %1952
      %1954 = vrot.lane.b32.xlu0 %v1896, 1
      %v1955 = vpop.permute.xlu0 %1954
      %1956 = vrot.lane.b32.xlu0 %v1895, 1
      %v1957 = vpop.permute.xlu0 %1956
      %1958 = vrot.lane.b32.xlu0 %v1897, 1
      %v1959 = vpop.permute.xlu0 %1958
      %v1960 = vsel %vm633, %v1953, %v1957
      %v1961 = vsel %vm633, %v1955, %v1959
      %v1962 = vsel %vm633, %v1957, %v1953
      %v1963 = vsel %vm633, %v1959, %v1955
      %v1964 = vmul.f32 %v1962, %v641
      %v1965 = vmul.f32 %v1960, %v645
      %v1966 = vmul.f32 %v1963, %v641
      %v1967 = vmul.f32 %v1961, %v645
      %v1968 = vpack.c.bf16 %v1966, %v1964
      %v1969 = vpack.c.bf16 %v1967, %v1965
      %v1970 = vpack.c.bf16 %v1896, %v1894
      %v1971 = vpack.c.bf16 %v1897, %v1895
      %1972 = vrot.lane.b32.xlu0 %v1894, 127
      %v1973 = vpop.permute.xlu0 %1972
      %1974 = vrot.lane.b32.xlu0 %v1896, 127
      %v1975 = vpop.permute.xlu0 %1974
      %1976 = vrot.lane.b32.xlu0 %v1895, 127
      %v1977 = vpop.permute.xlu0 %1976
      %1978 = vrot.lane.b32.xlu0 %v1897, 127
      %v1979 = vpop.permute.xlu0 %1978
      %v1980 = vsel %vm662, %v1973, %v1977
      %v1981 = vsel %vm662, %v1975, %v1979
      %v1982 = vsel %vm662, %v1977, %v1973
      %v1983 = vsel %vm662, %v1979, %v1975
      %v1984 = vmul.f32 %v1980, %v670
      %v1985 = vmul.f32 %v1982, %v674
      %v1986 = vmul.f32 %v1981, %v670
      %v1987 = vmul.f32 %v1983, %v674
      %v1988 = vpack.c.bf16 %v1986, %v1984
      %v1989 = vpack.c.bf16 %v1987, %v1985
      %1990 = vrot.lane.b32.xlu0 %v1894, 113
      %v1991 = vpop.permute.xlu0 %1990
      %1992 = vrot.lane.b32.xlu0 %v1896, 113
      %v1993 = vpop.permute.xlu0 %1992
      %1994 = vrot.lane.b32.xlu0 %v1895, 113
      %v1995 = vpop.permute.xlu0 %1994
      %1996 = vrot.lane.b32.xlu0 %v1897, 113
      %v1997 = vpop.permute.xlu0 %1996
      %v1998 = vsel %vm689, %v1991, %v1995
      %v1999 = vsel %vm689, %v1993, %v1997
      %v2000 = vsel %vm689, %v1995, %v1991
      %v2001 = vsel %vm689, %v1997, %v1993
      %v2002 = vmul.f32 %v1998, %v697
      %v2003 = vmul.f32 %v2000, %v701
      %v2004 = vmul.f32 %v1999, %v697
      %v2005 = vmul.f32 %v2001, %v701
      %v2006 = vpack.c.bf16 %v2004, %v2002
      %v2007 = vpack.c.bf16 %v2005, %v2003
      %2008 = vrot.lane.b32.xlu0 %v1894, 112
      %v2009 = vpop.permute.xlu0 %2008
      %2010 = vrot.lane.b32.xlu0 %v1896, 112
      %v2011 = vpop.permute.xlu0 %2010
      %2012 = vrot.lane.b32.xlu0 %v1895, 112
      %v2013 = vpop.permute.xlu0 %2012
      %2014 = vrot.lane.b32.xlu0 %v1897, 112
      %v2015 = vpop.permute.xlu0 %2014
      %v2016 = vsel %vm716, %v2009, %v2013
      %v2017 = vsel %vm716, %v2011, %v2015
      %v2018 = vsel %vm716, %v2013, %v2009
      %v2019 = vsel %vm716, %v2015, %v2011
      %v2020 = vmul.f32 %v2016, %v724
      %v2021 = vmul.f32 %v2018, %v728
      %v2022 = vmul.f32 %v2017, %v724
      %v2023 = vmul.f32 %v2019, %v728
      %v2024 = vpack.c.bf16 %v2022, %v2020
      %v2025 = vpack.c.bf16 %v2023, %v2021
      %2026 = vrot.lane.b32.xlu0 %v1894, 111
      %v2027 = vpop.permute.xlu0 %2026
      %2028 = vrot.lane.b32.xlu0 %v1896, 111
      %v2029 = vpop.permute.xlu0 %2028
      %2030 = vrot.lane.b32.xlu0 %v1895, 111
      %v2031 = vpop.permute.xlu0 %2030
      %2032 = vrot.lane.b32.xlu0 %v1897, 111
      %v2033 = vpop.permute.xlu0 %2032
      %v2034 = vsel %vm743, %v2027, %v2031
      %v2035 = vsel %vm743, %v2029, %v2033
      %v2036 = vsel %vm743, %v2031, %v2027
      %v2037 = vsel %vm743, %v2033, %v2029
      %v2038 = vmul.f32 %v2034, %v751
      %v2039 = vmul.f32 %v2036, %v755
      %v2040 = vmul.f32 %v2035, %v751
      %v2041 = vmul.f32 %v2037, %v755
      %v2042 = vpack.c.bf16 %v2040, %v2038
      %v2043 = vpack.c.bf16 %v2041, %v2039
      %v2044 = vld [vmem:[%s14] sm:$0xff]
      %v2045 = vld [vmem:[%s14 + $0x8] sm:$0xff]
      %v2046 = vld [vmem:[%s15] sm:$0xff]
      %v2047 = vld [vmem:[%s15 + $0x8] sm:$0xff]
      %2049 = vset.pattern.permute.xlu0 0
      %2050 = vperm.xlu0 %2049, %v2046
      %v2051 = vpop.permute.xlu0 %2050
      %2054 = vset.pattern.permute.xlu0 0
      %2055 = vperm.xlu0 %2054, %v2047
      %v2056 = vpop.permute.xlu0 %2055
      %v2060 = vunpack.c.l.b16 %v2044
      %v2061 = vunpack.c.h.b16 %v2044
      %v2062 = vunpack.c.l.b16 %v2045
      %v2063 = vunpack.c.h.b16 %v2045
      %v2064 = vpack.c.b16 %v2062, %v2060
      %v2065 = vpack.c.b16 %v2063, %v2061
      %v2068 = vsel %vm831, %v2065, 0
      %2070 = vmatprep.subr.bf16.mxu0 %v1915
      %2071 = vmatpush1.bf16.msra.mxu0 %v1914
      %2072 = vmatprep.subr.bf16.mxu0 %v1933
      %2073 = vmatpush1.bf16.msra.mxu0 %v1932
      %2074 = vmatprep.subr.bf16.mxu0 %v1951
      %2075 = vmatpush1.bf16.msra.mxu0 %v1950
      %2076 = vmatprep.subr.bf16.mxu0 %v1969
      %2077 = vmatpush1.bf16.msra.mxu0 %v1968
      %2078 = vmatprep.subr.bf16.mxu0 %v1971
      %2079 = vmatpush1.bf16.msra.mxu0 %v1970
      %2080 = vmatprep.subr.bf16.mxu0 %v1989
      %2081 = vmatpush1.bf16.msra.mxu0 %v1988
      %2082 = vmatprep.subr.bf16.mxu0 %v2007
      %2083 = vmatpush1.bf16.msra.mxu0 %v2006
      %2084 = vmatprep.subr.bf16.mxu0 %v2025
      %2085 = vmatpush1.bf16.msra.mxu0 %v2024
      %2086 = vmatprep.subr.bf16.mxu0 %v2043
      %2087 = vmatpush1.bf16.msra.mxu0 %v2042
      %2088 = vmatprep.subr.bf16.mxu0 0
      %2089 = vmatpush1.bf16.msra.mxu0 0
      %2090 = vmatprep.subr.bf16.mxu0 0
      %2091 = vmatpush1.bf16.msra.mxu0 0
      %2092 = vmatprep.subr.bf16.mxu0 0
      %2093 = vmatpush1.bf16.msra.mxu0 0
      %2094 = vmatprep.subr.bf16.mxu0 0
      %2095 = vmatpush1.bf16.msra.mxu0 0
      %2096 = vmatprep.subr.bf16.mxu0 0
      %2097 = vmatpush1.bf16.msra.mxu0 0
      %2098 = vmatprep.subr.bf16.mxu0 0
      %2099 = vmatpush1.bf16.msra.mxu0 0
      %2100 = vmatprep.subr.bf16.mxu0 0
      %2101 = vmatpush1.bf16.msra.mxu0 0
      %2102 = vmatprep.mubr.bf16.mxu0 %v2068
      %2103 = vmatmul.mubr.bf16.gmra.mrb[0].mxu0 %v2064
      %v2104 = vpop.f32.mrb[0].mxu0
      %v2105 = vadd.f32 %v2051, %v2104
      %v2106 = vpop.f32.mrb[0].mxu0
      %v2107 = vadd.f32 %v2051, %v2106
      %v2108 = vpop.f32.mrb[0].mxu0
      %v2109 = vadd.f32 %v2056, %v2108
      %v2110 = vpop.f32.mrb[0].mxu0
      %v2111 = vadd.f32 %v2056, %v2110
      %2112 = vdwg.mxu0
      %v2113 = vadd.f32 %v2105, %v1675
      %v2114 = vadd.f32 %v2107, %v1676
      %v2115 = vadd.f32 %v2109, %v1677
      %v2116 = vadd.f32 %v2111, %v1678
      %v2117 = vmax.f32 %v2113, 0.0
      %v2118 = vmax.f32 %v2114, 0.0
      %v2119 = vmax.f32 %v2115, 0.0
      %v2120 = vmax.f32 %v2116, 0.0
      %2121 = vst [vmem:[%s528] sm:$0xff] %v2117
      %2122 = vst [vmem:[%s528 + $0x8] sm:$0xff] %v2118
      %2123 = vst [vmem:[%s528 + $0x10] sm:$0xff] %v2119
      %2124 = vst [vmem:[%s528 + $0x18] sm:$0xff] %v2120
      %s2125 = smul.u32 2, %s27
      %p2126 = scmp.lt.s32.totalorder %s2125, 3
      %s2127 = scalar_select %p2126, %s2125, 3
      %s2128 = smul.addr %s2127, 2
      %s2129 = smul.addr %s2128, 8
      %s2130 = scalar_lea.vmem %s16, %s2129
      // Predicated region
      $region85: #{sar_module_forward.1} parent=83 // pred_check
        %p2131 = pneg %p386
      $region86: #{sar_module_forward.1} parent=83 // pred_check_branch
        %2133 = sbr.rel (%p2131) target = $region88
      $region87: #{sar_module_forward.1} parent=83 // pred_region
        %s2134 = smul.u32 2, %s27
      $region88: #{sar_module_forward.1} parent=83 // pred_fallthru
        _
    $region84: #{sar_module_forward.1} parent=5 // pred_fallthru
      _
    %p2135 = scmp.le.s32.totalorder 2, %s22
    // Predicated region
    $region89: #{sar_module_forward.1} parent=5 // pred_check
      %p2136 = pneg %p2135
    $region90: #{sar_module_forward.1} parent=5 // pred_check_branch
      %2138 = sbr.rel (%p2136) target = $region92
    $region91: #{sar_module_forward.1} parent=5 // pred_region
      %s2139 = ssub.s32 %s22, 2
      // Predicated region
      $region93: #{sar_module_forward.1} parent=91 // pred_check
        %p2140 = pneg %p392
      $region94: #{sar_module_forward.1} parent=91 // pred_check_branch
        %2142 = sbr.rel (%p2140) target = $region96
      $region95: #{sar_module_forward.1} parent=91 // pred_region
        %s2143 = smul.u32 2, %s28
        %p2144 = scmp.lt.s32.totalorder %s2143, 3
        %s2145 = scalar_select %p2144, %s2143, 3
        %s2146 = smul.addr %s2145, 2
        %s2147 = smul.addr %s2146, 8
        %s2148 = scalar_lea.vmem %s16, %s2147
      $region96: #{sar_module_forward.1} parent=91 // pred_fallthru
        _
    $region92: #{sar_module_forward.1} parent=5 // pred_fallthru
      _
  $region6: #{sar_module_forward.1} parent=0 // loop_footer
    %s26 = sadd.s32 1, %s22
  $region7: #{sar_module_forward.1} parent=0 // loop_footer_branch
    %21 = sbr.rel target = $region3
  $region8: #{sar_module_forward.1} parent=0 // loop_exit
    _

</llo_original>
